<compile_context>
chip_gen: v5e
topology: v5e:2x2
jax: 0.10.0
libtpu: 0.0.40
codegen_flags: <defaults>
</compile_context>

<pallas_src>
import functools

import jax
import jax.numpy as jnp
from jax.experimental import pallas as pl
from jax.experimental.pallas import tpu as pltpu


def _sigmoid(a):
    # Exact, overflow-safe sigmoid as a single EUP transcendental (tanh).
    return 0.5 * jnp.tanh(0.5 * a) + 0.5


def _outconv_kernel(x_ref, w0_ref, w1_ref, b_ref, o_ref, *, h, w, bblk):
    """One batch-block of images per grid step.

    x_ref : (bblk, C_in, H*W)    unpadded input, spatial flattened (lane-dense)
    w0_ref: (C_out, C_in)        conv weight tap kh = 0
    w1_ref: (C_out, C_in)        conv weight tap kh = 1
    b_ref : (C_out, 1)           conv bias (f32)
    o_ref : (bblk, C_out, Ho*Wo) output, spatial flattened
    """
    c_out = w0_ref.shape[0]
    wo = w + 6                    # output width  = W + 2*3   (kw = 1)
    ho = h + 7                    # output height = H + 2*4 - 2 + 1

    wt0 = w0_ref[...]             # native dtype straight to the MXU
    wt1 = w1_ref[...]
    b = b_ref[...]                # (C_out, 1) f32

    # Halo constant: receptive field entirely inside the zero padding.
    sig_b = _sigmoid(b)                                          # (C_out, 1)
    fill = jnp.broadcast_to(sig_b, (c_out, ho * wo)).astype(o_ref.dtype)

    for bi in range(bblk):
        xi = x_ref[bi]            # (C_in, H*W), lane-dense, native dtype

        # Two channel matmuls (one per kernel-height tap), f32 accumulate.
        y0 = jnp.dot(wt0, xi, preferred_element_type=jnp.float32)  # (C_out, H*W)
        y1 = jnp.dot(wt1, xi, preferred_element_type=jnp.float32)

        # Fill the whole image with the halo constant (one dense, lane-dense
        # store over Ho*Wo lanes), then overwrite the rows that touch data.
        o_ref[bi] = fill

        # Output row i = r + 3 (r in [0, H]) at columns [3, 3+W):
        #   val = b + y0[r-1] + y1[r]   (out-of-range taps drop out at the
        #                                first / last interior row)
        # Only static slices of the small f32 accumulators are taken here.
        for r in range(h + 1):
            val = b
            if r >= 1:
                val = val + y0[:, (r - 1) * w: r * w]
            if r <= h - 1:
                val = val + y1[:, r * w: (r + 1) * w]
            row = _sigmoid(val).astype(o_ref.dtype)                # (C_out, W)
            start = (r + 3) * wo + 3
            o_ref[bi, :, start: start + w] = row


def out_conv(x, weight, bias, *, batch_block=None):
    """x: [N, C_in, H, W]; weight: [C_out, C_in, 2, 1]; bias: [C_out]."""
    n, c_in, h, w = x.shape
    c_out, c_in_w, kh, kw = weight.shape
    assert (kh, kw) == (2, 1), "OutConv uses a fixed (2, 1) kernel"
    assert c_in_w == c_in
    ho, wo = h + 7, w + 6

    # Small images: pack a few per grid step to amortize per-step overhead.
    if batch_block is None:
        batch_block = 1
        for cand in (8, 4, 2):
            if n % cand == 0:
                batch_block = cand
                break
    assert n % batch_block == 0

    # Only free, contiguous reshapes — no jnp.pad / transpose anywhere.
    x_flat = x.reshape(n, c_in, h * w)
    w0 = weight[:, :, 0, 0]                      # (C_out, C_in) tap kh = 0
    w1 = weight[:, :, 1, 0]                      # (C_out, C_in) tap kh = 1
    b2 = bias.reshape(c_out, 1).astype(jnp.float32)

    kernel = functools.partial(_outconv_kernel, h=h, w=w, bblk=batch_block)

    # TODO(synk): for large images / channel counts, tile the H axis with a
    # one-row halo (own 1-row block or manual DMA), size tiles per generation
    # (v7x 64 MiB physical VMEM vs v5e/v6e 128 MiB, raise vmem_limit_bytes on
    # v5e/v6e), mark that tile axis "parallel" too, and tile C_out to the MXU
    # output dimension (and fuse the two taps into one K=2*C_in dot) when the
    # channel counts reach MXU size.
    out_flat = pl.pallas_call(
        kernel,
        out_shape=jax.ShapeDtypeStruct((n, c_out, ho * wo), x.dtype),
        grid_spec=pltpu.PrefetchScalarGridSpec(
            num_scalar_prefetch=0,
            grid=(n // batch_block,),
            in_specs=[
                pl.BlockSpec((batch_block, c_in, h * w), lambda i: (i, 0, 0)),
                pl.BlockSpec((c_out, c_in), lambda i: (0, 0)),
                pl.BlockSpec((c_out, c_in), lambda i: (0, 0)),
                pl.BlockSpec((c_out, 1), lambda i: (0, 0)),
            ],
            out_specs=pl.BlockSpec((batch_block, c_out, ho * wo),
                                   lambda i: (i, 0, 0)),
        ),
        compiler_params=pltpu.CompilerParams(
            dimension_semantics=("parallel",),
            # Per-step blocks here are tiny; 48 MiB keeps headroom under v7x's
            # 64 MiB physical VMEM.
            vmem_limit_bytes=48 * 1024 * 1024,
        ),
    )(x_flat, w0, w1, b2)

    # Free contiguous reshape back to NCHW output layout.
    return out_flat.reshape(n, c_out, ho, wo)


def _reference(x, weight, bias):
    """Pure-JAX reference mirroring the PyTorch module."""
    y = jax.lax.conv_general_dilated(
        x, weight, window_strides=(1, 1), padding=((4, 4), (3, 3)),
        dimension_numbers=("NCHW", "OIHW", "NCHW"))
    return jax.nn.sigmoid(y + bias[None, :, None, None])


if __name__ == "__main__":
    key = jax.random.PRNGKey(0)
    kx, kw_, kb = jax.random.split(key, 3)

    N, C_IN, C_OUT, H, W = 2, 4, 4, 16, 16
    x = jax.random.normal(kx, (N, C_IN, H, W), dtype=jnp.float32)
    # Conv2d(C_in, C_out, kernel_size=(2, 1)) weight shape: (C_out, C_in, 2, 1)
    weight = jax.random.normal(kw_, (C_OUT, C_IN, 2, 1), dtype=jnp.float32) * 0.5
    bias = jax.random.normal(kb, (C_OUT,), dtype=jnp.float32) * 0.1

    out = out_conv(x, weight, bias)
    out = jax.block_until_ready(out)

    ref = _reference(x, weight, bias)
    assert out.shape == ref.shape == (N, C_OUT, H + 7, W + 6)
    assert out.dtype == x.dtype
    # Exact sigmoid now; tolerance only covers MXU / EUP f32 rounding.
    assert jnp.allclose(out, ref, atol=1e-4, rtol=1e-4), "mismatch vs reference"

    print("KERNEL_OK")
</pallas_src>

<mosaic_0001>
module attributes {stable_mosaic.version = 11 : i64} {
  func.func @_outconv_kernel(%arg0: i32, %arg1: memref<2x4x256xf32, #tpu.memory_space<vmem>>, %arg2: memref<4x4xf32, #tpu.memory_space<vmem>>, %arg3: memref<4x4xf32, #tpu.memory_space<vmem>>, %arg4: memref<4x1xf32, #tpu.memory_space<vmem>>, %arg5: memref<2x4x506xf32, #tpu.memory_space<vmem>>) attributes {dimension_semantics = [#tpu.dimension_semantics<parallel>], iteration_bounds = array<i64: 1>, scalar_prefetch = 0 : i64, scratch_operands = 0 : i64, tpu.core_type = #tpu.core_type<tc>, window_params = [{transform_indices = @transform_0, window_bounds = array<i64: 2, 4, 256>}, {pipeline_mode = #tpu.pipeline_mode<synchronous>, transform_indices = @transform_1, window_bounds = array<i64: 4, 4>}, {pipeline_mode = #tpu.pipeline_mode<synchronous>, transform_indices = @transform_2, window_bounds = array<i64: 4, 4>}, {pipeline_mode = #tpu.pipeline_mode<synchronous>, transform_indices = @transform_3, window_bounds = array<i64: 4, 1>}, {transform_indices = @transform_4, window_bounds = array<i64: 2, 4, 506>}]} {
    %c0 = arith.constant 0 : index
    %c0_0 = arith.constant 0 : index
    %0 = vector.load %arg2[%c0, %c0_0] : memref<4x4xf32, #tpu.memory_space<vmem>>, vector<4x4xf32>
    %c0_1 = arith.constant 0 : index
    %c0_2 = arith.constant 0 : index
    %1 = vector.load %arg3[%c0_1, %c0_2] : memref<4x4xf32, #tpu.memory_space<vmem>>, vector<4x4xf32>
    %c0_3 = arith.constant 0 : index
    %c0_4 = arith.constant 0 : index
    %2 = vector.load %arg4[%c0_3, %c0_4] : memref<4x1xf32, #tpu.memory_space<vmem>>, vector<4x1xf32>
    %cst = arith.constant 5.000000e-01 : f32
    %3 = vector.broadcast %cst : f32 to vector<4x1xf32>
    %4 = arith.mulf %3, %2 : vector<4x1xf32>
    %5 = math.tanh %4 : vector<4x1xf32>
    %cst_5 = arith.constant 5.000000e-01 : f32
    %6 = vector.broadcast %cst_5 : f32 to vector<4x1xf32>
    %7 = arith.mulf %6, %5 : vector<4x1xf32>
    %cst_6 = arith.constant 5.000000e-01 : f32
    %8 = vector.broadcast %cst_6 : f32 to vector<4x1xf32>
    %9 = arith.addf %7, %8 : vector<4x1xf32>
    %10 = vector.shape_cast %9 : vector<4x1xf32> to vector<4x1xf32>
    %11 = vector.broadcast %10 : vector<4x1xf32> to vector<4x506xf32>
    %c0_7 = arith.constant 0 : index
    %c0_8 = arith.constant 0 : index
    %c0_9 = arith.constant 0 : index
    %12 = vector.load %arg1[%c0_7, %c0_8, %c0_9] : memref<2x4x256xf32, #tpu.memory_space<vmem>>, vector<1x4x256xf32>
    %13 = vector.shape_cast %12 : vector<1x4x256xf32> to vector<4x256xf32>
    %cst_10 = arith.constant dense<0.000000e+00> : vector<4x256xf32>
    %14 = tpu.matmul %0, %13, %cst_10 {dimension_numbers = #tpu.dot_dimension_numbers<[1], [0], [0], [1], [0, 0, 1, 1], [], []>} : vector<4x4xf32>, vector<4x256xf32>, vector<4x256xf32> -> vector<4x256xf32>
    %cst_11 = arith.constant dense<0.000000e+00> : vector<4x256xf32>
    %15 = tpu.matmul %1, %13, %cst_11 {dimension_numbers = #tpu.dot_dimension_numbers<[1], [0], [0], [1], [0, 0, 1, 1], [], []>} : vector<4x4xf32>, vector<4x256xf32>, vector<4x256xf32> -> vector<4x256xf32>
    %c0_12 = arith.constant 0 : index
    %c0_13 = arith.constant 0 : index
    %c0_14 = arith.constant 0 : index
    %16 = vector.load %arg5[%c0_12, %c0_13, %c0_14] : memref<2x4x506xf32, #tpu.memory_space<vmem>>, vector<1x4x506xf32>
    %17 = vector.shape_cast %16 : vector<1x4x506xf32> to vector<4x506xf32>
    %18 = vector.shape_cast %11 : vector<4x506xf32> to vector<1x4x506xf32>
    tpu.vector_store %arg5[%c0_12, %c0_13, %c0_14], %18 {strides = array<i32>} : memref<2x4x506xf32, #tpu.memory_space<vmem>>, vector<1x4x506xf32>,
    %19 = vector.extract_strided_slice %15 {offsets = [0, 0], sizes = [4, 16], strides = [1, 1]} : vector<4x256xf32> to vector<4x16xf32>
    %20 = vector.broadcast %2 : vector<4x1xf32> to vector<4x16xf32>
    %21 = arith.addf %20, %19 : vector<4x16xf32>
    %cst_15 = arith.constant 5.000000e-01 : f32
    %22 = vector.broadcast %cst_15 : f32 to vector<4x16xf32>
    %23 = arith.mulf %22, %21 : vector<4x16xf32>
    %24 = math.tanh %23 : vector<4x16xf32>
    %cst_16 = arith.constant 5.000000e-01 : f32
    %25 = vector.broadcast %cst_16 : f32 to vector<4x16xf32>
    %26 = arith.mulf %25, %24 : vector<4x16xf32>
    %cst_17 = arith.constant 5.000000e-01 : f32
    %27 = vector.broadcast %cst_17 : f32 to vector<4x16xf32>
    %28 = arith.addf %26, %27 : vector<4x16xf32>
    %c0_18 = arith.constant 0 : index
    %c0_19 = arith.constant 0 : index
    %c69 = arith.constant 69 : index
    %29 = vector.load %arg5[%c0_18, %c0_19, %c69] : memref<2x4x506xf32, #tpu.memory_space<vmem>>, vector<1x4x16xf32>
    %30 = vector.shape_cast %29 : vector<1x4x16xf32> to vector<4x16xf32>
    %31 = vector.shape_cast %28 : vector<4x16xf32> to vector<1x4x16xf32>
    tpu.vector_store %arg5[%c0_18, %c0_19, %c69], %31 {strides = array<i32>} : memref<2x4x506xf32, #tpu.memory_space<vmem>>, vector<1x4x16xf32>,
    %32 = vector.extract_strided_slice %14 {offsets = [0, 0], sizes = [4, 16], strides = [1, 1]} : vector<4x256xf32> to vector<4x16xf32>
    %33 = vector.broadcast %2 : vector<4x1xf32> to vector<4x16xf32>
    %34 = arith.addf %33, %32 : vector<4x16xf32>
    %35 = vector.extract_strided_slice %15 {offsets = [0, 16], sizes = [4, 16], strides = [1, 1]} : vector<4x256xf32> to vector<4x16xf32>
    %36 = arith.addf %34, %35 : vector<4x16xf32>
    %cst_20 = arith.constant 5.000000e-01 : f32
    %37 = vector.broadcast %cst_20 : f32 to vector<4x16xf32>
    %38 = arith.mulf %37, %36 : vector<4x16xf32>
    %39 = math.tanh %38 : vector<4x16xf32>
    %cst_21 = arith.constant 5.000000e-01 : f32
    %40 = vector.broadcast %cst_21 : f32 to vector<4x16xf32>
    %41 = arith.mulf %40, %39 : vector<4x16xf32>
    %cst_22 = arith.constant 5.000000e-01 : f32
    %42 = vector.broadcast %cst_22 : f32 to vector<4x16xf32>
    %43 = arith.addf %41, %42 : vector<4x16xf32>
    %c0_23 = arith.constant 0 : index
    %c0_24 = arith.constant 0 : index
    %c91 = arith.constant 91 : index
    %44 = vector.load %arg5[%c0_23, %c0_24, %c91] : memref<2x4x506xf32, #tpu.memory_space<vmem>>, vector<1x4x16xf32>
    %45 = vector.shape_cast %44 : vector<1x4x16xf32> to vector<4x16xf32>
    %46 = vector.shape_cast %43 : vector<4x16xf32> to vector<1x4x16xf32>
    tpu.vector_store %arg5[%c0_23, %c0_24, %c91], %46 {strides = array<i32>} : memref<2x4x506xf32, #tpu.memory_space<vmem>>, vector<1x4x16xf32>,
    %47 = vector.extract_strided_slice %14 {offsets = [0, 16], sizes = [4, 16], strides = [1, 1]} : vector<4x256xf32> to vector<4x16xf32>
    %48 = vector.broadcast %2 : vector<4x1xf32> to vector<4x16xf32>
    %49 = arith.addf %48, %47 : vector<4x16xf32>
    %50 = vector.extract_strided_slice %15 {offsets = [0, 32], sizes = [4, 16], strides = [1, 1]} : vector<4x256xf32> to vector<4x16xf32>
    %51 = arith.addf %49, %50 : vector<4x16xf32>
    %cst_25 = arith.constant 5.000000e-01 : f32
    %52 = vector.broadcast %cst_25 : f32 to vector<4x16xf32>
    %53 = arith.mulf %52, %51 : vector<4x16xf32>
    %54 = math.tanh %53 : vector<4x16xf32>
    %cst_26 = arith.constant 5.000000e-01 : f32
    %55 = vector.broadcast %cst_26 : f32 to vector<4x16xf32>
    %56 = arith.mulf %55, %54 : vector<4x16xf32>
    %cst_27 = arith.constant 5.000000e-01 : f32
    %57 = vector.broadcast %cst_27 : f32 to vector<4x16xf32>
    %58 = arith.addf %56, %57 : vector<4x16xf32>
    %c0_28 = arith.constant 0 : index
    %c0_29 = arith.constant 0 : index
    %c113 = arith.constant 113 : index
    %59 = vector.load %arg5[%c0_28, %c0_29, %c113] : memref<2x4x506xf32, #tpu.memory_space<vmem>>, vector<1x4x16xf32>
    %60 = vector.shape_cast %59 : vector<1x4x16xf32> to vector<4x16xf32>
    %61 = vector.shape_cast %58 : vector<4x16xf32> to vector<1x4x16xf32>
    tpu.vector_store %arg5[%c0_28, %c0_29, %c113], %61 {strides = array<i32>} : memref<2x4x506xf32, #tpu.memory_space<vmem>>, vector<1x4x16xf32>,
    %62 = vector.extract_strided_slice %14 {offsets = [0, 32], sizes = [4, 16], strides = [1, 1]} : vector<4x256xf32> to vector<4x16xf32>
    %63 = vector.broadcast %2 : vector<4x1xf32> to vector<4x16xf32>
    %64 = arith.addf %63, %62 : vector<4x16xf32>
    %65 = vector.extract_strided_slice %15 {offsets = [0, 48], sizes = [4, 16], strides = [1, 1]} : vector<4x256xf32> to vector<4x16xf32>
    %66 = arith.addf %64, %65 : vector<4x16xf32>
    %cst_30 = arith.constant 5.000000e-01 : f32
    %67 = vector.broadcast %cst_30 : f32 to vector<4x16xf32>
    %68 = arith.mulf %67, %66 : vector<4x16xf32>
    %69 = math.tanh %68 : vector<4x16xf32>
    %cst_31 = arith.constant 5.000000e-01 : f32
    %70 = vector.broadcast %cst_31 : f32 to vector<4x16xf32>
    %71 = arith.mulf %70, %69 : vector<4x16xf32>
    %cst_32 = arith.constant 5.000000e-01 : f32
    %72 = vector.broadcast %cst_32 : f32 to vector<4x16xf32>
    %73 = arith.addf %71, %72 : vector<4x16xf32>
    %c0_33 = arith.constant 0 : index
    %c0_34 = arith.constant 0 : index
    %c135 = arith.constant 135 : index
    %74 = vector.load %arg5[%c0_33, %c0_34, %c135] : memref<2x4x506xf32, #tpu.memory_space<vmem>>, vector<1x4x16xf32>
    %75 = vector.shape_cast %74 : vector<1x4x16xf32> to vector<4x16xf32>
    %76 = vector.shape_cast %73 : vector<4x16xf32> to vector<1x4x16xf32>
    tpu.vector_store %arg5[%c0_33, %c0_34, %c135], %76 {strides = array<i32>} : memref<2x4x506xf32, #tpu.memory_space<vmem>>, vector<1x4x16xf32>,
    %77 = vector.extract_strided_slice %14 {offsets = [0, 48], sizes = [4, 16], strides = [1, 1]} : vector<4x256xf32> to vector<4x16xf32>
    %78 = vector.broadcast %2 : vector<4x1xf32> to vector<4x16xf32>
    %79 = arith.addf %78, %77 : vector<4x16xf32>
    %80 = vector.extract_strided_slice %15 {offsets = [0, 64], sizes = [4, 16], strides = [1, 1]} : vector<4x256xf32> to vector<4x16xf32>
    %81 = arith.addf %79, %80 : vector<4x16xf32>
    %cst_35 = arith.constant 5.000000e-01 : f32
    %82 = vector.broadcast %cst_35 : f32 to vector<4x16xf32>
    %83 = arith.mulf %82, %81 : vector<4x16xf32>
    %84 = math.tanh %83 : vector<4x16xf32>
    %cst_36 = arith.constant 5.000000e-01 : f32
    %85 = vector.broadcast %cst_36 : f32 to vector<4x16xf32>
    %86 = arith.mulf %85, %84 : vector<4x16xf32>
    %cst_37 = arith.constant 5.000000e-01 : f32
    %87 = vector.broadcast %cst_37 : f32 to vector<4x16xf32>
    %88 = arith.addf %86, %87 : vector<4x16xf32>
    %c0_38 = arith.constant 0 : index
    %c0_39 = arith.constant 0 : index
    %c157 = arith.constant 157 : index
    %89 = vector.load %arg5[%c0_38, %c0_39, %c157] : memref<2x4x506xf32, #tpu.memory_space<vmem>>, vector<1x4x16xf32>
    %90 = vector.shape_cast %89 : vector<1x4x16xf32> to vector<4x16xf32>
    %91 = vector.shape_cast %88 : vector<4x16xf32> to vector<1x4x16xf32>
    tpu.vector_store %arg5[%c0_38, %c0_39, %c157], %91 {strides = array<i32>} : memref<2x4x506xf32, #tpu.memory_space<vmem>>, vector<1x4x16xf32>,
    %92 = vector.extract_strided_slice %14 {offsets = [0, 64], sizes = [4, 16], strides = [1, 1]} : vector<4x256xf32> to vector<4x16xf32>
    %93 = vector.broadcast %2 : vector<4x1xf32> to vector<4x16xf32>
    %94 = arith.addf %93, %92 : vector<4x16xf32>
    %95 = vector.extract_strided_slice %15 {offsets = [0, 80], sizes = [4, 16], strides = [1, 1]} : vector<4x256xf32> to vector<4x16xf32>
    %96 = arith.addf %94, %95 : vector<4x16xf32>
    %cst_40 = arith.constant 5.000000e-01 : f32
    %97 = vector.broadcast %cst_40 : f32 to vector<4x16xf32>
    %98 = arith.mulf %97, %96 : vector<4x16xf32>
    %99 = math.tanh %98 : vector<4x16xf32>
    %cst_41 = arith.constant 5.000000e-01 : f32
    %100 = vector.broadcast %cst_41 : f32 to vector<4x16xf32>
    %101 = arith.mulf %100, %99 : vector<4x16xf32>
    %cst_42 = arith.constant 5.000000e-01 : f32
    %102 = vector.broadcast %cst_42 : f32 to vector<4x16xf32>
    %103 = arith.addf %101, %102 : vector<4x16xf32>
    %c0_43 = arith.constant 0 : index
    %c0_44 = arith.constant 0 : index
    %c179 = arith.constant 179 : index
    %104 = vector.load %arg5[%c0_43, %c0_44, %c179] : memref<2x4x506xf32, #tpu.memory_space<vmem>>, vector<1x4x16xf32>
    %105 = vector.shape_cast %104 : vector<1x4x16xf32> to vector<4x16xf32>
    %106 = vector.shape_cast %103 : vector<4x16xf32> to vector<1x4x16xf32>
    tpu.vector_store %arg5[%c0_43, %c0_44, %c179], %106 {strides = array<i32>} : memref<2x4x506xf32, #tpu.memory_space<vmem>>, vector<1x4x16xf32>,
    %107 = vector.extract_strided_slice %14 {offsets = [0, 80], sizes = [4, 16], strides = [1, 1]} : vector<4x256xf32> to vector<4x16xf32>
    %108 = vector.broadcast %2 : vector<4x1xf32> to vector<4x16xf32>
    %109 = arith.addf %108, %107 : vector<4x16xf32>
    %110 = vector.extract_strided_slice %15 {offsets = [0, 96], sizes = [4, 16], strides = [1, 1]} : vector<4x256xf32> to vector<4x16xf32>
    %111 = arith.addf %109, %110 : vector<4x16xf32>
    %cst_45 = arith.constant 5.000000e-01 : f32
    %112 = vector.broadcast %cst_45 : f32 to vector<4x16xf32>
    %113 = arith.mulf %112, %111 : vector<4x16xf32>
    %114 = math.tanh %113 : vector<4x16xf32>
    %cst_46 = arith.constant 5.000000e-01 : f32
    %115 = vector.broadcast %cst_46 : f32 to vector<4x16xf32>
    %116 = arith.mulf %115, %114 : vector<4x16xf32>
    %cst_47 = arith.constant 5.000000e-01 : f32
    %117 = vector.broadcast %cst_47 : f32 to vector<4x16xf32>
    %118 = arith.addf %116, %117 : vector<4x16xf32>
    %c0_48 = arith.constant 0 : index
    %c0_49 = arith.constant 0 : index
    %c201 = arith.constant 201 : index
    %119 = vector.load %arg5[%c0_48, %c0_49, %c201] : memref<2x4x506xf32, #tpu.memory_space<vmem>>, vector<1x4x16xf32>
    %120 = vector.shape_cast %119 : vector<1x4x16xf32> to vector<4x16xf32>
    %121 = vector.shape_cast %118 : vector<4x16xf32> to vector<1x4x16xf32>
    tpu.vector_store %arg5[%c0_48, %c0_49, %c201], %121 {strides = array<i32>} : memref<2x4x506xf32, #tpu.memory_space<vmem>>, vector<1x4x16xf32>,
    %122 = vector.extract_strided_slice %14 {offsets = [0, 96], sizes = [4, 16], strides = [1, 1]} : vector<4x256xf32> to vector<4x16xf32>
    %123 = vector.broadcast %2 : vector<4x1xf32> to vector<4x16xf32>
    %124 = arith.addf %123, %122 : vector<4x16xf32>
    %125 = vector.extract_strided_slice %15 {offsets = [0, 112], sizes = [4, 16], strides = [1, 1]} : vector<4x256xf32> to vector<4x16xf32>
    %126 = arith.addf %124, %125 : vector<4x16xf32>
    %cst_50 = arith.constant 5.000000e-01 : f32
    %127 = vector.broadcast %cst_50 : f32 to vector<4x16xf32>
    %128 = arith.mulf %127, %126 : vector<4x16xf32>
    %129 = math.tanh %128 : vector<4x16xf32>
    %cst_51 = arith.constant 5.000000e-01 : f32
    %130 = vector.broadcast %cst_51 : f32 to vector<4x16xf32>
    %131 = arith.mulf %130, %129 : vector<4x16xf32>
    %cst_52 = arith.constant 5.000000e-01 : f32
    %132 = vector.broadcast %cst_52 : f32 to vector<4x16xf32>
    %133 = arith.addf %131, %132 : vector<4x16xf32>
    %c0_53 = arith.constant 0 : index
    %c0_54 = arith.constant 0 : index
    %c223 = arith.constant 223 : index
    %134 = vector.load %arg5[%c0_53, %c0_54, %c223] : memref<2x4x506xf32, #tpu.memory_space<vmem>>, vector<1x4x16xf32>
    %135 = vector.shape_cast %134 : vector<1x4x16xf32> to vector<4x16xf32>
    %136 = vector.shape_cast %133 : vector<4x16xf32> to vector<1x4x16xf32>
    tpu.vector_store %arg5[%c0_53, %c0_54, %c223], %136 {strides = array<i32>} : memref<2x4x506xf32, #tpu.memory_space<vmem>>, vector<1x4x16xf32>,
    %137 = vector.extract_strided_slice %14 {offsets = [0, 112], sizes = [4, 16], strides = [1, 1]} : vector<4x256xf32> to vector<4x16xf32>
    %138 = vector.broadcast %2 : vector<4x1xf32> to vector<4x16xf32>
    %139 = arith.addf %138, %137 : vector<4x16xf32>
    %140 = vector.extract_strided_slice %15 {offsets = [0, 128], sizes = [4, 16], strides = [1, 1]} : vector<4x256xf32> to vector<4x16xf32>
    %141 = arith.addf %139, %140 : vector<4x16xf32>
    %cst_55 = arith.constant 5.000000e-01 : f32
    %142 = vector.broadcast %cst_55 : f32 to vector<4x16xf32>
    %143 = arith.mulf %142, %141 : vector<4x16xf32>
    %144 = math.tanh %143 : vector<4x16xf32>
    %cst_56 = arith.constant 5.000000e-01 : f32
    %145 = vector.broadcast %cst_56 : f32 to vector<4x16xf32>
    %146 = arith.mulf %145, %144 : vector<4x16xf32>
    %cst_57 = arith.constant 5.000000e-01 : f32
    %147 = vector.broadcast %cst_57 : f32 to vector<4x16xf32>
    %148 = arith.addf %146, %147 : vector<4x16xf32>
    %c0_58 = arith.constant 0 : index
    %c0_59 = arith.constant 0 : index
    %c245 = arith.constant 245 : index
    %149 = vector.load %arg5[%c0_58, %c0_59, %c245] : memref<2x4x506xf32, #tpu.memory_space<vmem>>, vector<1x4x16xf32>
    %150 = vector.shape_cast %149 : vector<1x4x16xf32> to vector<4x16xf32>
    %151 = vector.shape_cast %148 : vector<4x16xf32> to vector<1x4x16xf32>
    tpu.vector_store %arg5[%c0_58, %c0_59, %c245], %151 {strides = array<i32>} : memref<2x4x506xf32, #tpu.memory_space<vmem>>, vector<1x4x16xf32>,
    %152 = vector.extract_strided_slice %14 {offsets = [0, 128], sizes = [4, 16], strides = [1, 1]} : vector<4x256xf32> to vector<4x16xf32>
    %153 = vector.broadcast %2 : vector<4x1xf32> to vector<4x16xf32>
    %154 = arith.addf %153, %152 : vector<4x16xf32>
    %155 = vector.extract_strided_slice %15 {offsets = [0, 144], sizes = [4, 16], strides = [1, 1]} : vector<4x256xf32> to vector<4x16xf32>
    %156 = arith.addf %154, %155 : vector<4x16xf32>
    %cst_60 = arith.constant 5.000000e-01 : f32
    %157 = vector.broadcast %cst_60 : f32 to vector<4x16xf32>
    %158 = arith.mulf %157, %156 : vector<4x16xf32>
    %159 = math.tanh %158 : vector<4x16xf32>
    %cst_61 = arith.constant 5.000000e-01 : f32
    %160 = vector.broadcast %cst_61 : f32 to vector<4x16xf32>
    %161 = arith.mulf %160, %159 : vector<4x16xf32>
    %cst_62 = arith.constant 5.000000e-01 : f32
    %162 = vector.broadcast %cst_62 : f32 to vector<4x16xf32>
    %163 = arith.addf %161, %162 : vector<4x16xf32>
    %c0_63 = arith.constant 0 : index
    %c0_64 = arith.constant 0 : index
    %c267 = arith.constant 267 : index
    %164 = vector.load %arg5[%c0_63, %c0_64, %c267] : memref<2x4x506xf32, #tpu.memory_space<vmem>>, vector<1x4x16xf32>
    %165 = vector.shape_cast %164 : vector<1x4x16xf32> to vector<4x16xf32>
    %166 = vector.shape_cast %163 : vector<4x16xf32> to vector<1x4x16xf32>
    tpu.vector_store %arg5[%c0_63, %c0_64, %c267], %166 {strides = array<i32>} : memref<2x4x506xf32, #tpu.memory_space<vmem>>, vector<1x4x16xf32>,
    %167 = vector.extract_strided_slice %14 {offsets = [0, 144], sizes = [4, 16], strides = [1, 1]} : vector<4x256xf32> to vector<4x16xf32>
    %168 = vector.broadcast %2 : vector<4x1xf32> to vector<4x16xf32>
    %169 = arith.addf %168, %167 : vector<4x16xf32>
    %170 = vector.extract_strided_slice %15 {offsets = [0, 160], sizes = [4, 16], strides = [1, 1]} : vector<4x256xf32> to vector<4x16xf32>
    %171 = arith.addf %169, %170 : vector<4x16xf32>
    %cst_65 = arith.constant 5.000000e-01 : f32
    %172 = vector.broadcast %cst_65 : f32 to vector<4x16xf32>
    %173 = arith.mulf %172, %171 : vector<4x16xf32>
    %174 = math.tanh %173 : vector<4x16xf32>
    %cst_66 = arith.constant 5.000000e-01 : f32
    %175 = vector.broadcast %cst_66 : f32 to vector<4x16xf32>
    %176 = arith.mulf %175, %174 : vector<4x16xf32>
    %cst_67 = arith.constant 5.000000e-01 : f32
    %177 = vector.broadcast %cst_67 : f32 to vector<4x16xf32>
    %178 = arith.addf %176, %177 : vector<4x16xf32>
    %c0_68 = arith.constant 0 : index
    %c0_69 = arith.constant 0 : index
    %c289 = arith.constant 289 : index
    %179 = vector.load %arg5[%c0_68, %c0_69, %c289] : memref<2x4x506xf32, #tpu.memory_space<vmem>>, vector<1x4x16xf32>
    %180 = vector.shape_cast %179 : vector<1x4x16xf32> to vector<4x16xf32>
    %181 = vector.shape_cast %178 : vector<4x16xf32> to vector<1x4x16xf32>
    tpu.vector_store %arg5[%c0_68, %c0_69, %c289], %181 {strides = array<i32>} : memref<2x4x506xf32, #tpu.memory_space<vmem>>, vector<1x4x16xf32>,
    %182 = vector.extract_strided_slice %14 {offsets = [0, 160], sizes = [4, 16], strides = [1, 1]} : vector<4x256xf32> to vector<4x16xf32>
    %183 = vector.broadcast %2 : vector<4x1xf32> to vector<4x16xf32>
    %184 = arith.addf %183, %182 : vector<4x16xf32>
    %185 = vector.extract_strided_slice %15 {offsets = [0, 176], sizes = [4, 16], strides = [1, 1]} : vector<4x256xf32> to vector<4x16xf32>
    %186 = arith.addf %184, %185 : vector<4x16xf32>
    %cst_70 = arith.constant 5.000000e-01 : f32
    %187 = vector.broadcast %cst_70 : f32 to vector<4x16xf32>
    %188 = arith.mulf %187, %186 : vector<4x16xf32>
    %189 = math.tanh %188 : vector<4x16xf32>
    %cst_71 = arith.constant 5.000000e-01 : f32
    %190 = vector.broadcast %cst_71 : f32 to vector<4x16xf32>
    %191 = arith.mulf %190, %189 : vector<4x16xf32>
    %cst_72 = arith.constant 5.000000e-01 : f32
    %192 = vector.broadcast %cst_72 : f32 to vector<4x16xf32>
    %193 = arith.addf %191, %192 : vector<4x16xf32>
    %c0_73 = arith.constant 0 : index
    %c0_74 = arith.constant 0 : index
    %c311 = arith.constant 311 : index
    %194 = vector.load %arg5[%c0_73, %c0_74, %c311] : memref<2x4x506xf32, #tpu.memory_space<vmem>>, vector<1x4x16xf32>
    %195 = vector.shape_cast %194 : vector<1x4x16xf32> to vector<4x16xf32>
    %196 = vector.shape_cast %193 : vector<4x16xf32> to vector<1x4x16xf32>
    tpu.vector_store %arg5[%c0_73, %c0_74, %c311], %196 {strides = array<i32>} : memref<2x4x506xf32, #tpu.memory_space<vmem>>, vector<1x4x16xf32>,
    %197 = vector.extract_strided_slice %14 {offsets = [0, 176], sizes = [4, 16], strides = [1, 1]} : vector<4x256xf32> to vector<4x16xf32>
    %198 = vector.broadcast %2 : vector<4x1xf32> to vector<4x16xf32>
    %199 = arith.addf %198, %197 : vector<4x16xf32>
    %200 = vector.extract_strided_slice %15 {offsets = [0, 192], sizes = [4, 16], strides = [1, 1]} : vector<4x256xf32> to vector<4x16xf32>
    %201 = arith.addf %199, %200 : vector<4x16xf32>
    %cst_75 = arith.constant 5.000000e-01 : f32
    %202 = vector.broadcast %cst_75 : f32 to vector<4x16xf32>
    %203 = arith.mulf %202, %201 : vector<4x16xf32>
    %204 = math.tanh %203 : vector<4x16xf32>
    %cst_76 = arith.constant 5.000000e-01 : f32
    %205 = vector.broadcast %cst_76 : f32 to vector<4x16xf32>
    %206 = arith.mulf %205, %204 : vector<4x16xf32>
    %cst_77 = arith.constant 5.000000e-01 : f32
    %207 = vector.broadcast %cst_77 : f32 to vector<4x16xf32>
    %208 = arith.addf %206, %207 : vector<4x16xf32>
    %c0_78 = arith.constant 0 : index
    %c0_79 = arith.constant 0 : index
    %c333 = arith.constant 333 : index
    %209 = vector.load %arg5[%c0_78, %c0_79, %c333] : memref<2x4x506xf32, #tpu.memory_space<vmem>>, vector<1x4x16xf32>
    %210 = vector.shape_cast %209 : vector<1x4x16xf32> to vector<4x16xf32>
    %211 = vector.shape_cast %208 : vector<4x16xf32> to vector<1x4x16xf32>
    tpu.vector_store %arg5[%c0_78, %c0_79, %c333], %211 {strides = array<i32>} : memref<2x4x506xf32, #tpu.memory_space<vmem>>, vector<1x4x16xf32>,
    %212 = vector.extract_strided_slice %14 {offsets = [0, 192], sizes = [4, 16], strides = [1, 1]} : vector<4x256xf32> to vector<4x16xf32>
    %213 = vector.broadcast %2 : vector<4x1xf32> to vector<4x16xf32>
    %214 = arith.addf %213, %212 : vector<4x16xf32>
    %215 = vector.extract_strided_slice %15 {offsets = [0, 208], sizes = [4, 16], strides = [1, 1]} : vector<4x256xf32> to vector<4x16xf32>
    %216 = arith.addf %214, %215 : vector<4x16xf32>
    %cst_80 = arith.constant 5.000000e-01 : f32
    %217 = vector.broadcast %cst_80 : f32 to vector<4x16xf32>
    %218 = arith.mulf %217, %216 : vector<4x16xf32>
    %219 = math.tanh %218 : vector<4x16xf32>
    %cst_81 = arith.constant 5.000000e-01 : f32
    %220 = vector.broadcast %cst_81 : f32 to vector<4x16xf32>
    %221 = arith.mulf %220, %219 : vector<4x16xf32>
    %cst_82 = arith.constant 5.000000e-01 : f32
    %222 = vector.broadcast %cst_82 : f32 to vector<4x16xf32>
    %223 = arith.addf %221, %222 : vector<4x16xf32>
    %c0_83 = arith.constant 0 : index
    %c0_84 = arith.constant 0 : index
    %c355 = arith.constant 355 : index
    %224 = vector.load %arg5[%c0_83, %c0_84, %c355] : memref<2x4x506xf32, #tpu.memory_space<vmem>>, vector<1x4x16xf32>
    %225 = vector.shape_cast %224 : vector<1x4x16xf32> to vector<4x16xf32>
    %226 = vector.shape_cast %223 : vector<4x16xf32> to vector<1x4x16xf32>
    tpu.vector_store %arg5[%c0_83, %c0_84, %c355], %226 {strides = array<i32>} : memref<2x4x506xf32, #tpu.memory_space<vmem>>, vector<1x4x16xf32>,
    %227 = vector.extract_strided_slice %14 {offsets = [0, 208], sizes = [4, 16], strides = [1, 1]} : vector<4x256xf32> to vector<4x16xf32>
    %228 = vector.broadcast %2 : vector<4x1xf32> to vector<4x16xf32>
    %229 = arith.addf %228, %227 : vector<4x16xf32>
    %230 = vector.extract_strided_slice %15 {offsets = [0, 224], sizes = [4, 16], strides = [1, 1]} : vector<4x256xf32> to vector<4x16xf32>
    %231 = arith.addf %229, %230 : vector<4x16xf32>
    %cst_85 = arith.constant 5.000000e-01 : f32
    %232 = vector.broadcast %cst_85 : f32 to vector<4x16xf32>
    %233 = arith.mulf %232, %231 : vector<4x16xf32>
    %234 = math.tanh %233 : vector<4x16xf32>
    %cst_86 = arith.constant 5.000000e-01 : f32
    %235 = vector.broadcast %cst_86 : f32 to vector<4x16xf32>
    %236 = arith.mulf %235, %234 : vector<4x16xf32>
    %cst_87 = arith.constant 5.000000e-01 : f32
    %237 = vector.broadcast %cst_87 : f32 to vector<4x16xf32>
    %238 = arith.addf %236, %237 : vector<4x16xf32>
    %c0_88 = arith.constant 0 : index
    %c0_89 = arith.constant 0 : index
    %c377 = arith.constant 377 : index
    %239 = vector.load %arg5[%c0_88, %c0_89, %c377] : memref<2x4x506xf32, #tpu.memory_space<vmem>>, vector<1x4x16xf32>
    %240 = vector.shape_cast %239 : vector<1x4x16xf32> to vector<4x16xf32>
    %241 = vector.shape_cast %238 : vector<4x16xf32> to vector<1x4x16xf32>
    tpu.vector_store %arg5[%c0_88, %c0_89, %c377], %241 {strides = array<i32>} : memref<2x4x506xf32, #tpu.memory_space<vmem>>, vector<1x4x16xf32>,
    %242 = vector.extract_strided_slice %14 {offsets = [0, 224], sizes = [4, 16], strides = [1, 1]} : vector<4x256xf32> to vector<4x16xf32>
    %243 = vector.broadcast %2 : vector<4x1xf32> to vector<4x16xf32>
    %244 = arith.addf %243, %242 : vector<4x16xf32>
    %245 = vector.extract_strided_slice %15 {offsets = [0, 240], sizes = [4, 16], strides = [1, 1]} : vector<4x256xf32> to vector<4x16xf32>
    %246 = arith.addf %244, %245 : vector<4x16xf32>
    %cst_90 = arith.constant 5.000000e-01 : f32
    %247 = vector.broadcast %cst_90 : f32 to vector<4x16xf32>
    %248 = arith.mulf %247, %246 : vector<4x16xf32>
    %249 = math.tanh %248 : vector<4x16xf32>
    %cst_91 = arith.constant 5.000000e-01 : f32
    %250 = vector.broadcast %cst_91 : f32 to vector<4x16xf32>
    %251 = arith.mulf %250, %249 : vector<4x16xf32>
    %cst_92 = arith.constant 5.000000e-01 : f32
    %252 = vector.broadcast %cst_92 : f32 to vector<4x16xf32>
    %253 = arith.addf %251, %252 : vector<4x16xf32>
    %c0_93 = arith.constant 0 : index
    %c0_94 = arith.constant 0 : index
    %c399 = arith.constant 399 : index
    %254 = vector.load %arg5[%c0_93, %c0_94, %c399] : memref<2x4x506xf32, #tpu.memory_space<vmem>>, vector<1x4x16xf32>
    %255 = vector.shape_cast %254 : vector<1x4x16xf32> to vector<4x16xf32>
    %256 = vector.shape_cast %253 : vector<4x16xf32> to vector<1x4x16xf32>
    tpu.vector_store %arg5[%c0_93, %c0_94, %c399], %256 {strides = array<i32>} : memref<2x4x506xf32, #tpu.memory_space<vmem>>, vector<1x4x16xf32>,
    %257 = vector.extract_strided_slice %14 {offsets = [0, 240], sizes = [4, 16], strides = [1, 1]} : vector<4x256xf32> to vector<4x16xf32>
    %258 = vector.broadcast %2 : vector<4x1xf32> to vector<4x16xf32>
    %259 = arith.addf %258, %257 : vector<4x16xf32>
    %cst_95 = arith.constant 5.000000e-01 : f32
    %260 = vector.broadcast %cst_95 : f32 to vector<4x16xf32>
    %261 = arith.mulf %260, %259 : vector<4x16xf32>
    %262 = math.tanh %261 : vector<4x16xf32>
    %cst_96 = arith.constant 5.000000e-01 : f32
    %263 = vector.broadcast %cst_96 : f32 to vector<4x16xf32>
    %264 = arith.mulf %263, %262 : vector<4x16xf32>
    %cst_97 = arith.constant 5.000000e-01 : f32
    %265 = vector.broadcast %cst_97 : f32 to vector<4x16xf32>
    %266 = arith.addf %264, %265 : vector<4x16xf32>
    %c0_98 = arith.constant 0 : index
    %c0_99 = arith.constant 0 : index
    %c421 = arith.constant 421 : index
    %267 = vector.load %arg5[%c0_98, %c0_99, %c421] : memref<2x4x506xf32, #tpu.memory_space<vmem>>, vector<1x4x16xf32>
    %268 = vector.shape_cast %267 : vector<1x4x16xf32> to vector<4x16xf32>
    %269 = vector.shape_cast %266 : vector<4x16xf32> to vector<1x4x16xf32>
    tpu.vector_store %arg5[%c0_98, %c0_99, %c421], %269 {strides = array<i32>} : memref<2x4x506xf32, #tpu.memory_space<vmem>>, vector<1x4x16xf32>,
    %c1 = arith.constant 1 : index
    %c0_100 = arith.constant 0 : index
    %c0_101 = arith.constant 0 : index
    %270 = vector.load %arg1[%c1, %c0_100, %c0_101] : memref<2x4x256xf32, #tpu.memory_space<vmem>>, vector<1x4x256xf32>
    %271 = vector.shape_cast %270 : vector<1x4x256xf32> to vector<4x256xf32>
    %cst_102 = arith.constant dense<0.000000e+00> : vector<4x256xf32>
    %272 = tpu.matmul %0, %271, %cst_102 {dimension_numbers = #tpu.dot_dimension_numbers<[1], [0], [0], [1], [0, 0, 1, 1], [], []>} : vector<4x4xf32>, vector<4x256xf32>, vector<4x256xf32> -> vector<4x256xf32>
    %cst_103 = arith.constant dense<0.000000e+00> : vector<4x256xf32>
    %273 = tpu.matmul %1, %271, %cst_103 {dimension_numbers = #tpu.dot_dimension_numbers<[1], [0], [0], [1], [0, 0, 1, 1], [], []>} : vector<4x4xf32>, vector<4x256xf32>, vector<4x256xf32> -> vector<4x256xf32>
    %c1_104 = arith.constant 1 : index
    %c0_105 = arith.constant 0 : index
    %c0_106 = arith.constant 0 : index
    %274 = vector.load %arg5[%c1_104, %c0_105, %c0_106] : memref<2x4x506xf32, #tpu.memory_space<vmem>>, vector<1x4x506xf32>
    %275 = vector.shape_cast %274 : vector<1x4x506xf32> to vector<4x506xf32>
    %276 = vector.shape_cast %11 : vector<4x506xf32> to vector<1x4x506xf32>
    tpu.vector_store %arg5[%c1_104, %c0_105, %c0_106], %276 {strides = array<i32>} : memref<2x4x506xf32, #tpu.memory_space<vmem>>, vector<1x4x506xf32>,
    %277 = vector.extract_strided_slice %273 {offsets = [0, 0], sizes = [4, 16], strides = [1, 1]} : vector<4x256xf32> to vector<4x16xf32>
    %278 = vector.broadcast %2 : vector<4x1xf32> to vector<4x16xf32>
    %279 = arith.addf %278, %277 : vector<4x16xf32>
    %cst_107 = arith.constant 5.000000e-01 : f32
    %280 = vector.broadcast %cst_107 : f32 to vector<4x16xf32>
    %281 = arith.mulf %280, %279 : vector<4x16xf32>
    %282 = math.tanh %281 : vector<4x16xf32>
    %cst_108 = arith.constant 5.000000e-01 : f32
    %283 = vector.broadcast %cst_108 : f32 to vector<4x16xf32>
    %284 = arith.mulf %283, %282 : vector<4x16xf32>
    %cst_109 = arith.constant 5.000000e-01 : f32
    %285 = vector.broadcast %cst_109 : f32 to vector<4x16xf32>
    %286 = arith.addf %284, %285 : vector<4x16xf32>
    %c1_110 = arith.constant 1 : index
    %c0_111 = arith.constant 0 : index
    %c69_112 = arith.constant 69 : index
    %287 = vector.load %arg5[%c1_110, %c0_111, %c69_112] : memref<2x4x506xf32, #tpu.memory_space<vmem>>, vector<1x4x16xf32>
    %288 = vector.shape_cast %287 : vector<1x4x16xf32> to vector<4x16xf32>
    %289 = vector.shape_cast %286 : vector<4x16xf32> to vector<1x4x16xf32>
    tpu.vector_store %arg5[%c1_110, %c0_111, %c69_112], %289 {strides = array<i32>} : memref<2x4x506xf32, #tpu.memory_space<vmem>>, vector<1x4x16xf32>,
    %290 = vector.extract_strided_slice %272 {offsets = [0, 0], sizes = [4, 16], strides = [1, 1]} : vector<4x256xf32> to vector<4x16xf32>
    %291 = vector.broadcast %2 : vector<4x1xf32> to vector<4x16xf32>
    %292 = arith.addf %291, %290 : vector<4x16xf32>
    %293 = vector.extract_strided_slice %273 {offsets = [0, 16], sizes = [4, 16], strides = [1, 1]} : vector<4x256xf32> to vector<4x16xf32>
    %294 = arith.addf %292, %293 : vector<4x16xf32>
    %cst_113 = arith.constant 5.000000e-01 : f32
    %295 = vector.broadcast %cst_113 : f32 to vector<4x16xf32>
    %296 = arith.mulf %295, %294 : vector<4x16xf32>
    %297 = math.tanh %296 : vector<4x16xf32>
    %cst_114 = arith.constant 5.000000e-01 : f32
    %298 = vector.broadcast %cst_114 : f32 to vector<4x16xf32>
    %299 = arith.mulf %298, %297 : vector<4x16xf32>
    %cst_115 = arith.constant 5.000000e-01 : f32
    %300 = vector.broadcast %cst_115 : f32 to vector<4x16xf32>
    %301 = arith.addf %299, %300 : vector<4x16xf32>
    %c1_116 = arith.constant 1 : index
    %c0_117 = arith.constant 0 : index
    %c91_118 = arith.constant 91 : index
    %302 = vector.load %arg5[%c1_116, %c0_117, %c91_118] : memref<2x4x506xf32, #tpu.memory_space<vmem>>, vector<1x4x16xf32>
    %303 = vector.shape_cast %302 : vector<1x4x16xf32> to vector<4x16xf32>
    %304 = vector.shape_cast %301 : vector<4x16xf32> to vector<1x4x16xf32>
    tpu.vector_store %arg5[%c1_116, %c0_117, %c91_118], %304 {strides = array<i32>} : memref<2x4x506xf32, #tpu.memory_space<vmem>>, vector<1x4x16xf32>,
    %305 = vector.extract_strided_slice %272 {offsets = [0, 16], sizes = [4, 16], strides = [1, 1]} : vector<4x256xf32> to vector<4x16xf32>
    %306 = vector.broadcast %2 : vector<4x1xf32> to vector<4x16xf32>
    %307 = arith.addf %306, %305 : vector<4x16xf32>
    %308 = vector.extract_strided_slice %273 {offsets = [0, 32], sizes = [4, 16], strides = [1, 1]} : vector<4x256xf32> to vector<4x16xf32>
    %309 = arith.addf %307, %308 : vector<4x16xf32>
    %cst_119 = arith.constant 5.000000e-01 : f32
    %310 = vector.broadcast %cst_119 : f32 to vector<4x16xf32>
    %311 = arith.mulf %310, %309 : vector<4x16xf32>
    %312 = math.tanh %311 : vector<4x16xf32>
    %cst_120 = arith.constant 5.000000e-01 : f32
    %313 = vector.broadcast %cst_120 : f32 to vector<4x16xf32>
    %314 = arith.mulf %313, %312 : vector<4x16xf32>
    %cst_121 = arith.constant 5.000000e-01 : f32
    %315 = vector.broadcast %cst_121 : f32 to vector<4x16xf32>
    %316 = arith.addf %314, %315 : vector<4x16xf32>
    %c1_122 = arith.constant 1 : index
    %c0_123 = arith.constant 0 : index
    %c113_124 = arith.constant 113 : index
    %317 = vector.load %arg5[%c1_122, %c0_123, %c113_124] : memref<2x4x506xf32, #tpu.memory_space<vmem>>, vector<1x4x16xf32>
    %318 = vector.shape_cast %317 : vector<1x4x16xf32> to vector<4x16xf32>
    %319 = vector.shape_cast %316 : vector<4x16xf32> to vector<1x4x16xf32>
    tpu.vector_store %arg5[%c1_122, %c0_123, %c113_124], %319 {strides = array<i32>} : memref<2x4x506xf32, #tpu.memory_space<vmem>>, vector<1x4x16xf32>,
    %320 = vector.extract_strided_slice %272 {offsets = [0, 32], sizes = [4, 16], strides = [1, 1]} : vector<4x256xf32> to vector<4x16xf32>
    %321 = vector.broadcast %2 : vector<4x1xf32> to vector<4x16xf32>
    %322 = arith.addf %321, %320 : vector<4x16xf32>
    %323 = vector.extract_strided_slice %273 {offsets = [0, 48], sizes = [4, 16], strides = [1, 1]} : vector<4x256xf32> to vector<4x16xf32>
    %324 = arith.addf %322, %323 : vector<4x16xf32>
    %cst_125 = arith.constant 5.000000e-01 : f32
    %325 = vector.broadcast %cst_125 : f32 to vector<4x16xf32>
    %326 = arith.mulf %325, %324 : vector<4x16xf32>
    %327 = math.tanh %326 : vector<4x16xf32>
    %cst_126 = arith.constant 5.000000e-01 : f32
    %328 = vector.broadcast %cst_126 : f32 to vector<4x16xf32>
    %329 = arith.mulf %328, %327 : vector<4x16xf32>
    %cst_127 = arith.constant 5.000000e-01 : f32
    %330 = vector.broadcast %cst_127 : f32 to vector<4x16xf32>
    %331 = arith.addf %329, %330 : vector<4x16xf32>
    %c1_128 = arith.constant 1 : index
    %c0_129 = arith.constant 0 : index
    %c135_130 = arith.constant 135 : index
    %332 = vector.load %arg5[%c1_128, %c0_129, %c135_130] : memref<2x4x506xf32, #tpu.memory_space<vmem>>, vector<1x4x16xf32>
    %333 = vector.shape_cast %332 : vector<1x4x16xf32> to vector<4x16xf32>
    %334 = vector.shape_cast %331 : vector<4x16xf32> to vector<1x4x16xf32>
    tpu.vector_store %arg5[%c1_128, %c0_129, %c135_130], %334 {strides = array<i32>} : memref<2x4x506xf32, #tpu.memory_space<vmem>>, vector<1x4x16xf32>,
    %335 = vector.extract_strided_slice %272 {offsets = [0, 48], sizes = [4, 16], strides = [1, 1]} : vector<4x256xf32> to vector<4x16xf32>
    %336 = vector.broadcast %2 : vector<4x1xf32> to vector<4x16xf32>
    %337 = arith.addf %336, %335 : vector<4x16xf32>
    %338 = vector.extract_strided_slice %273 {offsets = [0, 64], sizes = [4, 16], strides = [1, 1]} : vector<4x256xf32> to vector<4x16xf32>
    %339 = arith.addf %337, %338 : vector<4x16xf32>
    %cst_131 = arith.constant 5.000000e-01 : f32
    %340 = vector.broadcast %cst_131 : f32 to vector<4x16xf32>
    %341 = arith.mulf %340, %339 : vector<4x16xf32>
    %342 = math.tanh %341 : vector<4x16xf32>
    %cst_132 = arith.constant 5.000000e-01 : f32
    %343 = vector.broadcast %cst_132 : f32 to vector<4x16xf32>
    %344 = arith.mulf %343, %342 : vector<4x16xf32>
    %cst_133 = arith.constant 5.000000e-01 : f32
    %345 = vector.broadcast %cst_133 : f32 to vector<4x16xf32>
    %346 = arith.addf %344, %345 : vector<4x16xf32>
    %c1_134 = arith.constant 1 : index
    %c0_135 = arith.constant 0 : index
    %c157_136 = arith.constant 157 : index
    %347 = vector.load %arg5[%c1_134, %c0_135, %c157_136] : memref<2x4x506xf32, #tpu.memory_space<vmem>>, vector<1x4x16xf32>
    %348 = vector.shape_cast %347 : vector<1x4x16xf32> to vector<4x16xf32>
    %349 = vector.shape_cast %346 : vector<4x16xf32> to vector<1x4x16xf32>
    tpu.vector_store %arg5[%c1_134, %c0_135, %c157_136], %349 {strides = array<i32>} : memref<2x4x506xf32, #tpu.memory_space<vmem>>, vector<1x4x16xf32>,
    %350 = vector.extract_strided_slice %272 {offsets = [0, 64], sizes = [4, 16], strides = [1, 1]} : vector<4x256xf32> to vector<4x16xf32>
    %351 = vector.broadcast %2 : vector<4x1xf32> to vector<4x16xf32>
    %352 = arith.addf %351, %350 : vector<4x16xf32>
    %353 = vector.extract_strided_slice %273 {offsets = [0, 80], sizes = [4, 16], strides = [1, 1]} : vector<4x256xf32> to vector<4x16xf32>
    %354 = arith.addf %352, %353 : vector<4x16xf32>
    %cst_137 = arith.constant 5.000000e-01 : f32
    %355 = vector.broadcast %cst_137 : f32 to vector<4x16xf32>
    %356 = arith.mulf %355, %354 : vector<4x16xf32>
    %357 = math.tanh %356 : vector<4x16xf32>
    %cst_138 = arith.constant 5.000000e-01 : f32
    %358 = vector.broadcast %cst_138 : f32 to vector<4x16xf32>
    %359 = arith.mulf %358, %357 : vector<4x16xf32>
    %cst_139 = arith.constant 5.000000e-01 : f32
    %360 = vector.broadcast %cst_139 : f32 to vector<4x16xf32>
    %361 = arith.addf %359, %360 : vector<4x16xf32>
    %c1_140 = arith.constant 1 : index
    %c0_141 = arith.constant 0 : index
    %c179_142 = arith.constant 179 : index
    %362 = vector.load %arg5[%c1_140, %c0_141, %c179_142] : memref<2x4x506xf32, #tpu.memory_space<vmem>>, vector<1x4x16xf32>
    %363 = vector.shape_cast %362 : vector<1x4x16xf32> to vector<4x16xf32>
    %364 = vector.shape_cast %361 : vector<4x16xf32> to vector<1x4x16xf32>
    tpu.vector_store %arg5[%c1_140, %c0_141, %c179_142], %364 {strides = array<i32>} : memref<2x4x506xf32, #tpu.memory_space<vmem>>, vector<1x4x16xf32>,
    %365 = vector.extract_strided_slice %272 {offsets = [0, 80], sizes = [4, 16], strides = [1, 1]} : vector<4x256xf32> to vector<4x16xf32>
    %366 = vector.broadcast %2 : vector<4x1xf32> to vector<4x16xf32>
    %367 = arith.addf %366, %365 : vector<4x16xf32>
    %368 = vector.extract_strided_slice %273 {offsets = [0, 96], sizes = [4, 16], strides = [1, 1]} : vector<4x256xf32> to vector<4x16xf32>
    %369 = arith.addf %367, %368 : vector<4x16xf32>
    %cst_143 = arith.constant 5.000000e-01 : f32
    %370 = vector.broadcast %cst_143 : f32 to vector<4x16xf32>
    %371 = arith.mulf %370, %369 : vector<4x16xf32>
    %372 = math.tanh %371 : vector<4x16xf32>
    %cst_144 = arith.constant 5.000000e-01 : f32
    %373 = vector.broadcast %cst_144 : f32 to vector<4x16xf32>
    %374 = arith.mulf %373, %372 : vector<4x16xf32>
    %cst_145 = arith.constant 5.000000e-01 : f32
    %375 = vector.broadcast %cst_145 : f32 to vector<4x16xf32>
    %376 = arith.addf %374, %375 : vector<4x16xf32>
    %c1_146 = arith.constant 1 : index
    %c0_147 = arith.constant 0 : index
    %c201_148 = arith.constant 201 : index
    %377 = vector.load %arg5[%c1_146, %c0_147, %c201_148] : memref<2x4x506xf32, #tpu.memory_space<vmem>>, vector<1x4x16xf32>
    %378 = vector.shape_cast %377 : vector<1x4x16xf32> to vector<4x16xf32>
    %379 = vector.shape_cast %376 : vector<4x16xf32> to vector<1x4x16xf32>
    tpu.vector_store %arg5[%c1_146, %c0_147, %c201_148], %379 {strides = array<i32>} : memref<2x4x506xf32, #tpu.memory_space<vmem>>, vector<1x4x16xf32>,
    %380 = vector.extract_strided_slice %272 {offsets = [0, 96], sizes = [4, 16], strides = [1, 1]} : vector<4x256xf32> to vector<4x16xf32>
    %381 = vector.broadcast %2 : vector<4x1xf32> to vector<4x16xf32>
    %382 = arith.addf %381, %380 : vector<4x16xf32>
    %383 = vector.extract_strided_slice %273 {offsets = [0, 112], sizes = [4, 16], strides = [1, 1]} : vector<4x256xf32> to vector<4x16xf32>
    %384 = arith.addf %382, %383 : vector<4x16xf32>
    %cst_149 = arith.constant 5.000000e-01 : f32
    %385 = vector.broadcast %cst_149 : f32 to vector<4x16xf32>
    %386 = arith.mulf %385, %384 : vector<4x16xf32>
    %387 = math.tanh %386 : vector<4x16xf32>
    %cst_150 = arith.constant 5.000000e-01 : f32
    %388 = vector.broadcast %cst_150 : f32 to vector<4x16xf32>
    %389 = arith.mulf %388, %387 : vector<4x16xf32>
    %cst_151 = arith.constant 5.000000e-01 : f32
    %390 = vector.broadcast %cst_151 : f32 to vector<4x16xf32>
    %391 = arith.addf %389, %390 : vector<4x16xf32>
    %c1_152 = arith.constant 1 : index
    %c0_153 = arith.constant 0 : index
    %c223_154 = arith.constant 223 : index
    %392 = vector.load %arg5[%c1_152, %c0_153, %c223_154] : memref<2x4x506xf32, #tpu.memory_space<vmem>>, vector<1x4x16xf32>
    %393 = vector.shape_cast %392 : vector<1x4x16xf32> to vector<4x16xf32>
    %394 = vector.shape_cast %391 : vector<4x16xf32> to vector<1x4x16xf32>
    tpu.vector_store %arg5[%c1_152, %c0_153, %c223_154], %394 {strides = array<i32>} : memref<2x4x506xf32, #tpu.memory_space<vmem>>, vector<1x4x16xf32>,
    %395 = vector.extract_strided_slice %272 {offsets = [0, 112], sizes = [4, 16], strides = [1, 1]} : vector<4x256xf32> to vector<4x16xf32>
    %396 = vector.broadcast %2 : vector<4x1xf32> to vector<4x16xf32>
    %397 = arith.addf %396, %395 : vector<4x16xf32>
    %398 = vector.extract_strided_slice %273 {offsets = [0, 128], sizes = [4, 16], strides = [1, 1]} : vector<4x256xf32> to vector<4x16xf32>
    %399 = arith.addf %397, %398 : vector<4x16xf32>
    %cst_155 = arith.constant 5.000000e-01 : f32
    %400 = vector.broadcast %cst_155 : f32 to vector<4x16xf32>
    %401 = arith.mulf %400, %399 : vector<4x16xf32>
    %402 = math.tanh %401 : vector<4x16xf32>
    %cst_156 = arith.constant 5.000000e-01 : f32
    %403 = vector.broadcast %cst_156 : f32 to vector<4x16xf32>
    %404 = arith.mulf %403, %402 : vector<4x16xf32>
    %cst_157 = arith.constant 5.000000e-01 : f32
    %405 = vector.broadcast %cst_157 : f32 to vector<4x16xf32>
    %406 = arith.addf %404, %405 : vector<4x16xf32>
    %c1_158 = arith.constant 1 : index
    %c0_159 = arith.constant 0 : index
    %c245_160 = arith.constant 245 : index
    %407 = vector.load %arg5[%c1_158, %c0_159, %c245_160] : memref<2x4x506xf32, #tpu.memory_space<vmem>>, vector<1x4x16xf32>
    %408 = vector.shape_cast %407 : vector<1x4x16xf32> to vector<4x16xf32>
    %409 = vector.shape_cast %406 : vector<4x16xf32> to vector<1x4x16xf32>
    tpu.vector_store %arg5[%c1_158, %c0_159, %c245_160], %409 {strides = array<i32>} : memref<2x4x506xf32, #tpu.memory_space<vmem>>, vector<1x4x16xf32>,
    %410 = vector.extract_strided_slice %272 {offsets = [0, 128], sizes = [4, 16], strides = [1, 1]} : vector<4x256xf32> to vector<4x16xf32>
    %411 = vector.broadcast %2 : vector<4x1xf32> to vector<4x16xf32>
    %412 = arith.addf %411, %410 : vector<4x16xf32>
    %413 = vector.extract_strided_slice %273 {offsets = [0, 144], sizes = [4, 16], strides = [1, 1]} : vector<4x256xf32> to vector<4x16xf32>
    %414 = arith.addf %412, %413 : vector<4x16xf32>
    %cst_161 = arith.constant 5.000000e-01 : f32
    %415 = vector.broadcast %cst_161 : f32 to vector<4x16xf32>
    %416 = arith.mulf %415, %414 : vector<4x16xf32>
    %417 = math.tanh %416 : vector<4x16xf32>
    %cst_162 = arith.constant 5.000000e-01 : f32
    %418 = vector.broadcast %cst_162 : f32 to vector<4x16xf32>
    %419 = arith.mulf %418, %417 : vector<4x16xf32>
    %cst_163 = arith.constant 5.000000e-01 : f32
    %420 = vector.broadcast %cst_163 : f32 to vector<4x16xf32>
    %421 = arith.addf %419, %420 : vector<4x16xf32>
    %c1_164 = arith.constant 1 : index
    %c0_165 = arith.constant 0 : index
    %c267_166 = arith.constant 267 : index
    %422 = vector.load %arg5[%c1_164, %c0_165, %c267_166] : memref<2x4x506xf32, #tpu.memory_space<vmem>>, vector<1x4x16xf32>
    %423 = vector.shape_cast %422 : vector<1x4x16xf32> to vector<4x16xf32>
    %424 = vector.shape_cast %421 : vector<4x16xf32> to vector<1x4x16xf32>
    tpu.vector_store %arg5[%c1_164, %c0_165, %c267_166], %424 {strides = array<i32>} : memref<2x4x506xf32, #tpu.memory_space<vmem>>, vector<1x4x16xf32>,
    %425 = vector.extract_strided_slice %272 {offsets = [0, 144], sizes = [4, 16], strides = [1, 1]} : vector<4x256xf32> to vector<4x16xf32>
    %426 = vector.broadcast %2 : vector<4x1xf32> to vector<4x16xf32>
    %427 = arith.addf %426, %425 : vector<4x16xf32>
    %428 = vector.extract_strided_slice %273 {offsets = [0, 160], sizes = [4, 16], strides = [1, 1]} : vector<4x256xf32> to vector<4x16xf32>
    %429 = arith.addf %427, %428 : vector<4x16xf32>
    %cst_167 = arith.constant 5.000000e-01 : f32
    %430 = vector.broadcast %cst_167 : f32 to vector<4x16xf32>
    %431 = arith.mulf %430, %429 : vector<4x16xf32>
    %432 = math.tanh %431 : vector<4x16xf32>
    %cst_168 = arith.constant 5.000000e-01 : f32
    %433 = vector.broadcast %cst_168 : f32 to vector<4x16xf32>
    %434 = arith.mulf %433, %432 : vector<4x16xf32>
    %cst_169 = arith.constant 5.000000e-01 : f32
    %435 = vector.broadcast %cst_169 : f32 to vector<4x16xf32>
    %436 = arith.addf %434, %435 : vector<4x16xf32>
    %c1_170 = arith.constant 1 : index
    %c0_171 = arith.constant 0 : index
    %c289_172 = arith.constant 289 : index
    %437 = vector.load %arg5[%c1_170, %c0_171, %c289_172] : memref<2x4x506xf32, #tpu.memory_space<vmem>>, vector<1x4x16xf32>
    %438 = vector.shape_cast %437 : vector<1x4x16xf32> to vector<4x16xf32>
    %439 = vector.shape_cast %436 : vector<4x16xf32> to vector<1x4x16xf32>
    tpu.vector_store %arg5[%c1_170, %c0_171, %c289_172], %439 {strides = array<i32>} : memref<2x4x506xf32, #tpu.memory_space<vmem>>, vector<1x4x16xf32>,
    %440 = vector.extract_strided_slice %272 {offsets = [0, 160], sizes = [4, 16], strides = [1, 1]} : vector<4x256xf32> to vector<4x16xf32>
    %441 = vector.broadcast %2 : vector<4x1xf32> to vector<4x16xf32>
    %442 = arith.addf %441, %440 : vector<4x16xf32>
    %443 = vector.extract_strided_slice %273 {offsets = [0, 176], sizes = [4, 16], strides = [1, 1]} : vector<4x256xf32> to vector<4x16xf32>
    %444 = arith.addf %442, %443 : vector<4x16xf32>
    %cst_173 = arith.constant 5.000000e-01 : f32
    %445 = vector.broadcast %cst_173 : f32 to vector<4x16xf32>
    %446 = arith.mulf %445, %444 : vector<4x16xf32>
    %447 = math.tanh %446 : vector<4x16xf32>
    %cst_174 = arith.constant 5.000000e-01 : f32
    %448 = vector.broadcast %cst_174 : f32 to vector<4x16xf32>
    %449 = arith.mulf %448, %447 : vector<4x16xf32>
    %cst_175 = arith.constant 5.000000e-01 : f32
    %450 = vector.broadcast %cst_175 : f32 to vector<4x16xf32>
    %451 = arith.addf %449, %450 : vector<4x16xf32>
    %c1_176 = arith.constant 1 : index
    %c0_177 = arith.constant 0 : index
    %c311_178 = arith.constant 311 : index
    %452 = vector.load %arg5[%c1_176, %c0_177, %c311_178] : memref<2x4x506xf32, #tpu.memory_space<vmem>>, vector<1x4x16xf32>
    %453 = vector.shape_cast %452 : vector<1x4x16xf32> to vector<4x16xf32>
    %454 = vector.shape_cast %451 : vector<4x16xf32> to vector<1x4x16xf32>
    tpu.vector_store %arg5[%c1_176, %c0_177, %c311_178], %454 {strides = array<i32>} : memref<2x4x506xf32, #tpu.memory_space<vmem>>, vector<1x4x16xf32>,
    %455 = vector.extract_strided_slice %272 {offsets = [0, 176], sizes = [4, 16], strides = [1, 1]} : vector<4x256xf32> to vector<4x16xf32>
    %456 = vector.broadcast %2 : vector<4x1xf32> to vector<4x16xf32>
    %457 = arith.addf %456, %455 : vector<4x16xf32>
    %458 = vector.extract_strided_slice %273 {offsets = [0, 192], sizes = [4, 16], strides = [1, 1]} : vector<4x256xf32> to vector<4x16xf32>
    %459 = arith.addf %457, %458 : vector<4x16xf32>
    %cst_179 = arith.constant 5.000000e-01 : f32
    %460 = vector.broadcast %cst_179 : f32 to vector<4x16xf32>
    %461 = arith.mulf %460, %459 : vector<4x16xf32>
    %462 = math.tanh %461 : vector<4x16xf32>
    %cst_180 = arith.constant 5.000000e-01 : f32
    %463 = vector.broadcast %cst_180 : f32 to vector<4x16xf32>
    %464 = arith.mulf %463, %462 : vector<4x16xf32>
    %cst_181 = arith.constant 5.000000e-01 : f32
    %465 = vector.broadcast %cst_181 : f32 to vector<4x16xf32>
    %466 = arith.addf %464, %465 : vector<4x16xf32>
    %c1_182 = arith.constant 1 : index
    %c0_183 = arith.constant 0 : index
    %c333_184 = arith.constant 333 : index
    %467 = vector.load %arg5[%c1_182, %c0_183, %c333_184] : memref<2x4x506xf32, #tpu.memory_space<vmem>>, vector<1x4x16xf32>
    %468 = vector.shape_cast %467 : vector<1x4x16xf32> to vector<4x16xf32>
    %469 = vector.shape_cast %466 : vector<4x16xf32> to vector<1x4x16xf32>
    tpu.vector_store %arg5[%c1_182, %c0_183, %c333_184], %469 {strides = array<i32>} : memref<2x4x506xf32, #tpu.memory_space<vmem>>, vector<1x4x16xf32>,
    %470 = vector.extract_strided_slice %272 {offsets = [0, 192], sizes = [4, 16], strides = [1, 1]} : vector<4x256xf32> to vector<4x16xf32>
    %471 = vector.broadcast %2 : vector<4x1xf32> to vector<4x16xf32>
    %472 = arith.addf %471, %470 : vector<4x16xf32>
    %473 = vector.extract_strided_slice %273 {offsets = [0, 208], sizes = [4, 16], strides = [1, 1]} : vector<4x256xf32> to vector<4x16xf32>
    %474 = arith.addf %472, %473 : vector<4x16xf32>
    %cst_185 = arith.constant 5.000000e-01 : f32
    %475 = vector.broadcast %cst_185 : f32 to vector<4x16xf32>
    %476 = arith.mulf %475, %474 : vector<4x16xf32>
    %477 = math.tanh %476 : vector<4x16xf32>
    %cst_186 = arith.constant 5.000000e-01 : f32
    %478 = vector.broadcast %cst_186 : f32 to vector<4x16xf32>
    %479 = arith.mulf %478, %477 : vector<4x16xf32>
    %cst_187 = arith.constant 5.000000e-01 : f32
    %480 = vector.broadcast %cst_187 : f32 to vector<4x16xf32>
    %481 = arith.addf %479, %480 : vector<4x16xf32>
    %c1_188 = arith.constant 1 : index
    %c0_189 = arith.constant 0 : index
    %c355_190 = arith.constant 355 : index
    %482 = vector.load %arg5[%c1_188, %c0_189, %c355_190] : memref<2x4x506xf32, #tpu.memory_space<vmem>>, vector<1x4x16xf32>
    %483 = vector.shape_cast %482 : vector<1x4x16xf32> to vector<4x16xf32>
    %484 = vector.shape_cast %481 : vector<4x16xf32> to vector<1x4x16xf32>
    tpu.vector_store %arg5[%c1_188, %c0_189, %c355_190], %484 {strides = array<i32>} : memref<2x4x506xf32, #tpu.memory_space<vmem>>, vector<1x4x16xf32>,
    %485 = vector.extract_strided_slice %272 {offsets = [0, 208], sizes = [4, 16], strides = [1, 1]} : vector<4x256xf32> to vector<4x16xf32>
    %486 = vector.broadcast %2 : vector<4x1xf32> to vector<4x16xf32>
    %487 = arith.addf %486, %485 : vector<4x16xf32>
    %488 = vector.extract_strided_slice %273 {offsets = [0, 224], sizes = [4, 16], strides = [1, 1]} : vector<4x256xf32> to vector<4x16xf32>
    %489 = arith.addf %487, %488 : vector<4x16xf32>
    %cst_191 = arith.constant 5.000000e-01 : f32
    %490 = vector.broadcast %cst_191 : f32 to vector<4x16xf32>
    %491 = arith.mulf %490, %489 : vector<4x16xf32>
    %492 = math.tanh %491 : vector<4x16xf32>
    %cst_192 = arith.constant 5.000000e-01 : f32
    %493 = vector.broadcast %cst_192 : f32 to vector<4x16xf32>
    %494 = arith.mulf %493, %492 : vector<4x16xf32>
    %cst_193 = arith.constant 5.000000e-01 : f32
    %495 = vector.broadcast %cst_193 : f32 to vector<4x16xf32>
    %496 = arith.addf %494, %495 : vector<4x16xf32>
    %c1_194 = arith.constant 1 : index
    %c0_195 = arith.constant 0 : index
    %c377_196 = arith.constant 377 : index
    %497 = vector.load %arg5[%c1_194, %c0_195, %c377_196] : memref<2x4x506xf32, #tpu.memory_space<vmem>>, vector<1x4x16xf32>
    %498 = vector.shape_cast %497 : vector<1x4x16xf32> to vector<4x16xf32>
    %499 = vector.shape_cast %496 : vector<4x16xf32> to vector<1x4x16xf32>
    tpu.vector_store %arg5[%c1_194, %c0_195, %c377_196], %499 {strides = array<i32>} : memref<2x4x506xf32, #tpu.memory_space<vmem>>, vector<1x4x16xf32>,
    %500 = vector.extract_strided_slice %272 {offsets = [0, 224], sizes = [4, 16], strides = [1, 1]} : vector<4x256xf32> to vector<4x16xf32>
    %501 = vector.broadcast %2 : vector<4x1xf32> to vector<4x16xf32>
    %502 = arith.addf %501, %500 : vector<4x16xf32>
    %503 = vector.extract_strided_slice %273 {offsets = [0, 240], sizes = [4, 16], strides = [1, 1]} : vector<4x256xf32> to vector<4x16xf32>
    %504 = arith.addf %502, %503 : vector<4x16xf32>
    %cst_197 = arith.constant 5.000000e-01 : f32
    %505 = vector.broadcast %cst_197 : f32 to vector<4x16xf32>
    %506 = arith.mulf %505, %504 : vector<4x16xf32>
    %507 = math.tanh %506 : vector<4x16xf32>
    %cst_198 = arith.constant 5.000000e-01 : f32
    %508 = vector.broadcast %cst_198 : f32 to vector<4x16xf32>
    %509 = arith.mulf %508, %507 : vector<4x16xf32>
    %cst_199 = arith.constant 5.000000e-01 : f32
    %510 = vector.broadcast %cst_199 : f32 to vector<4x16xf32>
    %511 = arith.addf %509, %510 : vector<4x16xf32>
    %c1_200 = arith.constant 1 : index
    %c0_201 = arith.constant 0 : index
    %c399_202 = arith.constant 399 : index
    %512 = vector.load %arg5[%c1_200, %c0_201, %c399_202] : memref<2x4x506xf32, #tpu.memory_space<vmem>>, vector<1x4x16xf32>
    %513 = vector.shape_cast %512 : vector<1x4x16xf32> to vector<4x16xf32>
    %514 = vector.shape_cast %511 : vector<4x16xf32> to vector<1x4x16xf32>
    tpu.vector_store %arg5[%c1_200, %c0_201, %c399_202], %514 {strides = array<i32>} : memref<2x4x506xf32, #tpu.memory_space<vmem>>, vector<1x4x16xf32>,
    %515 = vector.extract_strided_slice %272 {offsets = [0, 240], sizes = [4, 16], strides = [1, 1]} : vector<4x256xf32> to vector<4x16xf32>
    %516 = vector.broadcast %2 : vector<4x1xf32> to vector<4x16xf32>
    %517 = arith.addf %516, %515 : vector<4x16xf32>
    %cst_203 = arith.constant 5.000000e-01 : f32
    %518 = vector.broadcast %cst_203 : f32 to vector<4x16xf32>
    %519 = arith.mulf %518, %517 : vector<4x16xf32>
    %520 = math.tanh %519 : vector<4x16xf32>
    %cst_204 = arith.constant 5.000000e-01 : f32
    %521 = vector.broadcast %cst_204 : f32 to vector<4x16xf32>
    %522 = arith.mulf %521, %520 : vector<4x16xf32>
    %cst_205 = arith.constant 5.000000e-01 : f32
    %523 = vector.broadcast %cst_205 : f32 to vector<4x16xf32>
    %524 = arith.addf %522, %523 : vector<4x16xf32>
    %c1_206 = arith.constant 1 : index
    %c0_207 = arith.constant 0 : index
    %c421_208 = arith.constant 421 : index
    %525 = vector.load %arg5[%c1_206, %c0_207, %c421_208] : memref<2x4x506xf32, #tpu.memory_space<vmem>>, vector<1x4x16xf32>
    %526 = vector.shape_cast %525 : vector<1x4x16xf32> to vector<4x16xf32>
    %527 = vector.shape_cast %524 : vector<4x16xf32> to vector<1x4x16xf32>
    tpu.vector_store %arg5[%c1_206, %c0_207, %c421_208], %527 {strides = array<i32>} : memref<2x4x506xf32, #tpu.memory_space<vmem>>, vector<1x4x16xf32>,
    return
  }
  func.func @transform_0(%arg0: i32) -> (i32, i32, i32) {
    %c0_i32 = arith.constant 0 : i32
    %c0_i32_0 = arith.constant 0 : i32
    %c0_i32_1 = arith.constant 0 : i32
    return %arg0, %c0_i32, %c0_i32_0 : i32, i32, i32
  }
  func.func @transform_1(%arg0: i32) -> (i32, i32) {
    %c0_i32 = arith.constant 0 : i32
    %c0_i32_0 = arith.constant 0 : i32
    %c0_i32_1 = arith.constant 0 : i32
    return %c0_i32, %c0_i32_0 : i32, i32
  }
  func.func @transform_2(%arg0: i32) -> (i32, i32) {
    %c0_i32 = arith.constant 0 : i32
    %c0_i32_0 = arith.constant 0 : i32
    %c0_i32_1 = arith.constant 0 : i32
    return %c0_i32, %c0_i32_0 : i32, i32
  }
  func.func @transform_3(%arg0: i32) -> (i32, i32) {
    %c0_i32 = arith.constant 0 : i32
    %c0_i32_0 = arith.constant 0 : i32
    %c0_i32_1 = arith.constant 0 : i32
    return %c0_i32, %c0_i32_0 : i32, i32
  }
  func.func @transform_4(%arg0: i32) -> (i32, i32, i32) {
    %c0_i32 = arith.constant 0 : i32
    %c0_i32_0 = arith.constant 0 : i32
    %c0_i32_1 = arith.constant 0 : i32
    return %arg0, %c0_i32, %c0_i32_0 : i32, i32, i32
  }
}

</mosaic_0001>

<llo_original>
// kernel: tpu_custom_call.1
$region0: #{tpu_custom_call.1}
  #allocation0 [shape = 'u32[]', space=smem, size = 0x4, offset = 0x4, fixed_abs, tag = 'smem constant byte address 0x4 - core index']
  #allocation1 [shape = 'u32[72,128]{1,0:T(1,128)}', space=vmem, size = 0x9000, scoped, tag = 'internal scratch']
  %s0 = inlined_call_operand.hbm [shape: f32[2,4,256], index: 0, kind: input, shape index: {}]
  %s1 = inlined_call_operand.vmem [shape: f32[4,4], index: 1, kind: input, shape index: {}]
  %s2 = inlined_call_operand.hbm [shape: f32[4,4], index: 2, kind: input, shape index: {}]
  %s3 = inlined_call_operand.vmem [shape: f32[4,1], index: 3, kind: input, shape index: {}]
  %s4 = inlined_call_operand.hbm [shape: f32[2,4,506], index: 4, kind: output, shape index: {}]
  %s5 = sld [smem:[#allocation0]]
  $region34: #{tpu_custom_call.1} parent=0
    _
  %s7 = ssub.s32 1, %s5
  %s8 = scalar_select 0, %s7, %s5
  $region1: #{tpu_custom_call.1} parent=0
    #allocation2 [shape = 'u8[8192]{0}', space=vmem, size = 0x2000, scoped, tag = 'input window, operand 0, single buffered']
    #allocation3 [shape = 's32[1]{0}', space=sflag, size = 0x4, scoped, tag = 'scoped memory for tpu_custom_call.1']
    #allocation4 [shape = 's32[1]{0}', space=sflag, size = 0x4, scoped, tag = 'scoped memory for tpu_custom_call.1']
    #allocation5 [shape = 'u8[2048]{0}', space=vmem, size = 0x800, scoped, tag = 'input window, operand 2, single buffered']
    #allocation6 [shape = 's32[1]{0}', space=sflag, size = 0x4, scoped, tag = 'scoped memory for tpu_custom_call.1']
    #allocation7 [shape = 'u8[16384]{0}', space=vmem, size = 0x4000, scoped, tag = 'output window, operand 0, single buffered']
    %9 = vsyncpa [#allocation3], 0
    %10 = vsyncpa [#allocation6], 0
    %11 = vsyncpa [#allocation4], 0
    // Predicated region
    $region2: #{tpu_custom_call.1} parent=1 // pred_check
      _
    $region3: #{tpu_custom_call.1} parent=1 // pred_check_branch
      %13 = sbr.rel (0) target = $region5
    $region4: #{tpu_custom_call.1} parent=1 // pred_region
      %15 = vsyncadd [#allocation3], 0
      %s16 = sshll.u32 %s0, 4
      %s17 = int_to_ptr.hbm [resolvable:$true] %s16
      %s18 = sshll.u32 [#allocation2], 4
      %s19 = int_to_ptr.vmem [resolvable:$true] %s18
      %24 = dma.hbm_to_vmem [thread:$0]  %s17, 256, %s19, [#allocation3], 128, 128, 8
    $region5: #{tpu_custom_call.1} parent=1 // pred_fallthru
      _
    // Predicated region
    $region6: #{tpu_custom_call.1} parent=1 // pred_check
      _
    $region7: #{tpu_custom_call.1} parent=1 // pred_check_branch
      %26 = sbr.rel (0) target = $region9
    $region8: #{tpu_custom_call.1} parent=1 // pred_region
      _
    $region9: #{tpu_custom_call.1} parent=1 // pred_fallthru
      _
    // Predicated region
    $region10: #{tpu_custom_call.1} parent=1 // pred_check
      _
    $region11: #{tpu_custom_call.1} parent=1 // pred_check_branch
      %28 = sbr.rel (0) target = $region13
    $region12: #{tpu_custom_call.1} parent=1 // pred_region
      %30 = vsyncadd [#allocation6], 0
      %s32 = sshll.u32 %s2, 4
      %s33 = int_to_ptr.hbm [resolvable:$true] %s32
      %s34 = sshll.u32 [#allocation5], 4
      %s35 = int_to_ptr.vmem [resolvable:$true] %s34
      %37 = dma.hbm_to_vmem [thread:$0]  %s33, 64, %s35, [#allocation6]
    $region13: #{tpu_custom_call.1} parent=1 // pred_fallthru
      _
    // Predicated region
    $region14: #{tpu_custom_call.1} parent=1 // pred_check
      _
    $region15: #{tpu_custom_call.1} parent=1 // pred_check_branch
      %39 = sbr.rel (0) target = $region17
    $region16: #{tpu_custom_call.1} parent=1 // pred_region
      _
    $region17: #{tpu_custom_call.1} parent=1 // pred_fallthru
      _
    // Predicated region
    $region18: #{tpu_custom_call.1} parent=1 // pred_check
      _
    $region19: #{tpu_custom_call.1} parent=1 // pred_check_branch
      %41 = sbr.rel (0) target = $region21
    $region20: #{tpu_custom_call.1} parent=1 // pred_region
      %43 = dma.done [#allocation3], 256
    $region21: #{tpu_custom_call.1} parent=1 // pred_fallthru
      _
    // Predicated region
    $region22: #{tpu_custom_call.1} parent=1 // pred_check
      _
    $region23: #{tpu_custom_call.1} parent=1 // pred_check_branch
      %45 = sbr.rel (0) target = $region25
    $region24: #{tpu_custom_call.1} parent=1 // pred_region
      %47 = dma.done [#allocation6], 64
    $region25: #{tpu_custom_call.1} parent=1 // pred_fallthru
      _
    %v48 = vld [vmem:[%s1] sm:$0xf]
    %v49 = vld [vmem:[#allocation5] sm:$0xf]
    %v50 = vld [vmem:[%s3] sm:$0xf]
    %v51 = vmul.f32 %v50, 0.5
    %v52 = vtanh.pop %v51
    %v53 = vmul.f32 %v52, 0.5
    %v54 = vadd.f32 %v53, 0.5
    %v55 = vld [vmem:[#allocation2] sm:$0xff]
    %57 = vst [vmem:[#allocation1] ss:$2 sm:$0xff] %v55
    %v58 = vld.sshfl [vmem:[#allocation1] sm:$0xff pattern:$0x75316420]
    %v59 = vld.sshfl [vmem:[#allocation1 + $0x8] sm:$0xff pattern:$0x75316420]
    %vm60 = vcmask 31744
    %v62 = vsel %vm60, %v48, 0
    %vm64 = vcmask 1043456
    %v65 = vsel %vm64, %v58, 0
    %v67 = vsel %vm64, %v59, 0
    %69 = vmatpush.msra.mxu0 0.0
    %70 = vmatpush.msra.mxu0 0.0
    %71 = vmatpush.msra.mxu0 0.0
    %72 = vmatpush.msra.mxu0 0.0
    %73 = vmatpush.msra.mxu0 0.0
    %74 = vmatpush.msra.mxu0 0.0
    %75 = vmatpush.msra.mxu0 0.0
    %76 = vmatpush.msra.mxu0 0.0
    %77 = vmatpush.msra.mxu0 0.0
    %78 = vmatpush.msra.mxu0 0.0
    %79 = vmatpush.msra.mxu0 0.0
    %80 = vmatpush.msra.mxu0 0.0
    %81 = vmatpush.msra.mxu0 0.0
    %82 = vmatpush.msra.mxu0 0.0
    %83 = vmatpush.msra.mxu0 0.0
    %84 = vmatpush.msra.mxu0 %v65
    %85 = vmatmul.f32.gmra.mxu0 %v62
    %v86 = vpop.f32.mrf.mxu0
    %v87 = vadd.f32 0.0, %v86
    %88 = vdwg.mxu0
    %89 = vmatpush.msra.mxu0 0.0
    %90 = vmatpush.msra.mxu0 0.0
    %91 = vmatpush.msra.mxu0 0.0
    %92 = vmatpush.msra.mxu0 0.0
    %93 = vmatpush.msra.mxu0 0.0
    %94 = vmatpush.msra.mxu0 0.0
    %95 = vmatpush.msra.mxu0 0.0
    %96 = vmatpush.msra.mxu0 0.0
    %97 = vmatpush.msra.mxu0 0.0
    %98 = vmatpush.msra.mxu0 0.0
    %99 = vmatpush.msra.mxu0 0.0
    %100 = vmatpush.msra.mxu0 0.0
    %101 = vmatpush.msra.mxu0 0.0
    %102 = vmatpush.msra.mxu0 0.0
    %103 = vmatpush.msra.mxu0 0.0
    %104 = vmatpush.msra.mxu0 %v67
    %105 = vmatmul.f32.gmra.mxu0 %v62
    %v106 = vpop.f32.mrf.mxu0
    %v107 = vadd.f32 0.0, %v106
    %108 = vdwg.mxu0
    %109 = vst [vmem:[#allocation1] ss:$2 sm:$0xff] %v55
    %v110 = vld.sshfl [vmem:[#allocation1] sm:$0xff pattern:$0x75316420]
    %v111 = vld.sshfl [vmem:[#allocation1 + $0x8] sm:$0xff pattern:$0x75316420]
    %v113 = vsel %vm60, %v49, 0
    %v115 = vsel %vm64, %v110, 0
    %v117 = vsel %vm64, %v111, 0
    %119 = vmatpush.msra.mxu0 0.0
    %120 = vmatpush.msra.mxu0 0.0
    %121 = vmatpush.msra.mxu0 0.0
    %122 = vmatpush.msra.mxu0 0.0
    %123 = vmatpush.msra.mxu0 0.0
    %124 = vmatpush.msra.mxu0 0.0
    %125 = vmatpush.msra.mxu0 0.0
    %126 = vmatpush.msra.mxu0 0.0
    %127 = vmatpush.msra.mxu0 0.0
    %128 = vmatpush.msra.mxu0 0.0
    %129 = vmatpush.msra.mxu0 0.0
    %130 = vmatpush.msra.mxu0 0.0
    %131 = vmatpush.msra.mxu0 0.0
    %132 = vmatpush.msra.mxu0 0.0
    %133 = vmatpush.msra.mxu0 0.0
    %134 = vmatpush.msra.mxu0 %v115
    %135 = vmatmul.f32.gmra.mxu0 %v113
    %v136 = vpop.f32.mrf.mxu0
    %v137 = vadd.f32 0.0, %v136
    %138 = vdwg.mxu0
    %139 = vmatpush.msra.mxu0 0.0
    %140 = vmatpush.msra.mxu0 0.0
    %141 = vmatpush.msra.mxu0 0.0
    %142 = vmatpush.msra.mxu0 0.0
    %143 = vmatpush.msra.mxu0 0.0
    %144 = vmatpush.msra.mxu0 0.0
    %145 = vmatpush.msra.mxu0 0.0
    %146 = vmatpush.msra.mxu0 0.0
    %147 = vmatpush.msra.mxu0 0.0
    %148 = vmatpush.msra.mxu0 0.0
    %149 = vmatpush.msra.mxu0 0.0
    %150 = vmatpush.msra.mxu0 0.0
    %151 = vmatpush.msra.mxu0 0.0
    %152 = vmatpush.msra.mxu0 0.0
    %153 = vmatpush.msra.mxu0 0.0
    %154 = vmatpush.msra.mxu0 %v117
    %155 = vmatmul.f32.gmra.mxu0 %v113
    %v156 = vpop.f32.mrf.mxu0
    %v157 = vadd.f32 0.0, %v156
    %158 = vdwg.mxu0
    %160 = vset.pattern.permute.xlu0 0
    %161 = vperm.xlu0 %160, %v54
    %v162 = vpop.permute.xlu0 %161
    %v164 = vunpack.c.l.s4 839922192
    %v165 = vunpack.c.0.s8 %v164
    %v166 = vperm.slane %v162, %v165
    %168 = vst [vmem:[#allocation7] sm:$0xff] %v166
    %vm169 = vcmask 998404
    %vm170 = vmor %vm169, %vm64
    %171 = vst.msk [vmem:[#allocation7 + $0x8] sm:$0xff] %vm170, %v166
    %173 = vset.pattern.permute.xlu0 0
    %174 = vperm.xlu0 %173, %v50
    %v175 = vpop.permute.xlu0 %174
    %v177 = vadd.f32 %v175, %v137
    %v178 = vmul.f32 %v177, 0.5
    %v179 = vtanh.pop %v178
    %v180 = vmul.f32 %v179, 0.5
    %v181 = vadd.f32 %v180, 0.5
    %183 = vrot.lane.b32.xlu0 %v181, 69
    %v184 = vpop.permute.xlu0 %183
    %vm186 = vcmask 691752
    %187 = vst.msk [vmem:[#allocation7] sm:$0xf] %vm186, %v184
    %v188 = vadd.f32 %v175, %v87
    %190 = vrot.lane.b32.xlu0 %v137, 112
    %v191 = vpop.permute.xlu0 %190
    %v193 = vadd.f32 %v188, %v191
    %v194 = vmul.f32 %v193, 0.5
    %v195 = vtanh.pop %v194
    %v196 = vmul.f32 %v195, 0.5
    %v197 = vadd.f32 %v196, 0.5
    %199 = vrot.lane.b32.xlu0 %v197, 91
    %v200 = vpop.permute.xlu0 %199
    %vm202 = vcmask 872152
    %203 = vst.msk [vmem:[#allocation7] sm:$0xf] %vm202, %v200
    %204 = vrot.lane.b32.xlu0 %v197, 97
    %v205 = vpop.permute.xlu0 %204
    %v206 = vrot.slane %v205, 4
    %vm207 = vcmask 793600
    %v208 = vsel %vm207, %v206, %v205
    %vm210 = vcmask 1044360
    %vm211 = vcmask 7172
    %vm212 = vmor %vm211, %vm210
    %213 = vst.msk [vmem:[#allocation7] sm:$0xff] %vm212, %v208
    %214 = vrot.lane.b32.xlu0 %v197, 103
    %v215 = vpop.permute.xlu0 %214
    %vm217 = vcmask 183352
    %218 = vst.msk [vmem:[#allocation7 + $0x4] sm:$0xf] %vm217, %v215
    %219 = vrot.lane.b32.xlu0 %v197, 109
    %v220 = vpop.permute.xlu0 %219
    %vm222 = vcmask 363752
    %223 = vst.msk [vmem:[#allocation7 + $0x4] sm:$0xf] %vm222, %v220
    %224 = vrot.lane.b32.xlu0 %v197, 115
    %v225 = vpop.permute.xlu0 %224
    %vm227 = vcmask 544152
    %228 = vst.msk [vmem:[#allocation7 + $0x4] sm:$0xf] %vm227, %v225
    %229 = vrot.lane.b32.xlu0 %v197, 121
    %v230 = vpop.permute.xlu0 %229
    %vm232 = vcmask 724552
    %233 = vst.msk [vmem:[#allocation7 + $0x4] sm:$0xf] %vm232, %v230
    %234 = vrot.lane.b32.xlu0 %v197, 127
    %v235 = vpop.permute.xlu0 %234
    %vm237 = vcmask 904952
    %238 = vst.msk [vmem:[#allocation7 + $0x4] sm:$0xf] %vm237, %v235
    %240 = vrot.lane.b32.xlu0 %v157, 112
    %v241 = vpop.permute.xlu0 %240
    %v243 = vadd.f32 %v188, %v241
    %v244 = vmul.f32 %v243, 0.5
    %v245 = vtanh.pop %v244
    %v246 = vmul.f32 %v245, 0.5
    %v247 = vadd.f32 %v246, 0.5
    %249 = vrot.lane.b32.xlu0 %v247, 5
    %v250 = vpop.permute.xlu0 %249
    %v251 = vrot.slane %v250, 4
    %vm252 = vcmask 39936
    %v253 = vsel %vm252, %v251, %v250
    %vm255 = vcmask 1044392
    %vm256 = vcmask 39940
    %vm257 = vmor %vm256, %vm255
    %258 = vst.msk [vmem:[#allocation7 + $0x4] sm:$0xff] %vm257, %v253
    %v259 = vadd.f32 %v175, %v107
    %v260 = vadd.f32 %v259, %v241
    %v261 = vmul.f32 %v260, 0.5
    %v262 = vtanh.pop %v261
    %v263 = vmul.f32 %v262, 0.5
    %v264 = vadd.f32 %v263, 0.5
    %266 = vrot.lane.b32.xlu0 %v264, 11
    %v267 = vpop.permute.xlu0 %266
    %vm269 = vcmask 216152
    %270 = vst.msk [vmem:[#allocation7 + $0x8] sm:$0xf] %vm269, %v267
    %271 = vrot.lane.b32.xlu0 %v264, 17
    %v272 = vpop.permute.xlu0 %271
    %vm274 = vcmask 396552
    %275 = vst.msk [vmem:[#allocation7 + $0x8] sm:$0xf] %vm274, %v272
    %276 = vrot.lane.b32.xlu0 %v264, 23
    %v277 = vpop.permute.xlu0 %276
    %vm279 = vcmask 576952
    %280 = vst.msk [vmem:[#allocation7 + $0x8] sm:$0xf] %vm279, %v277
    %281 = vrot.lane.b32.xlu0 %v264, 29
    %v282 = vpop.permute.xlu0 %281
    %vm284 = vcmask 757352
    %285 = vst.msk [vmem:[#allocation7 + $0x8] sm:$0xf] %vm284, %v282
    %286 = vrot.lane.b32.xlu0 %v264, 35
    %v287 = vpop.permute.xlu0 %286
    %vm289 = vcmask 937752
    %290 = vst.msk [vmem:[#allocation7 + $0x8] sm:$0xf] %vm289, %v287
    %291 = vrot.lane.b32.xlu0 %v264, 41
    %v292 = vpop.permute.xlu0 %291
    %v293 = vrot.slane %v292, 4
    %vm294 = vcmask 334848
    %v295 = vsel %vm294, %v293, %v292
    %vm297 = vcmask 1044424
    %vm298 = vcmask 72708
    %vm299 = vmor %vm298, %vm297
    %300 = vst.msk [vmem:[#allocation7 + $0x8] sm:$0xff] %vm299, %v295
    %301 = vrot.lane.b32.xlu0 %v264, 47
    %v302 = vpop.permute.xlu0 %301
    %vm304 = vcmask 248952
    %305 = vst.msk [vmem:[#allocation7 + $0xc] sm:$0xf] %vm304, %v302
    %v306 = vmul.f32 %v259, 0.5
    %v307 = vtanh.pop %v306
    %v308 = vmul.f32 %v307, 0.5
    %v309 = vadd.f32 %v308, 0.5
    %311 = vrot.lane.b32.xlu0 %v309, 53
    %v312 = vpop.permute.xlu0 %311
    %vm314 = vcmask 429352
    %315 = vst.msk [vmem:[#allocation7 + $0xc] sm:$0xf] %vm314, %v312
    %s316 = scalar_lea.vmem [#allocation2], 8
    %v317 = vld [vmem:[%s316] sm:$0xff]
    %319 = vst [vmem:[#allocation1] ss:$2 sm:$0xff] %v317
    %v320 = vld.sshfl [vmem:[#allocation1] sm:$0xff pattern:$0x75316420]
    %v321 = vld.sshfl [vmem:[#allocation1 + $0x8] sm:$0xff pattern:$0x75316420]
    %v322 = vsel %vm64, %v320, 0
    %v324 = vsel %vm64, %v321, 0
    %326 = vmatpush.msra.mxu0 0.0
    %327 = vmatpush.msra.mxu0 0.0
    %328 = vmatpush.msra.mxu0 0.0
    %329 = vmatpush.msra.mxu0 0.0
    %330 = vmatpush.msra.mxu0 0.0
    %331 = vmatpush.msra.mxu0 0.0
    %332 = vmatpush.msra.mxu0 0.0
    %333 = vmatpush.msra.mxu0 0.0
    %334 = vmatpush.msra.mxu0 0.0
    %335 = vmatpush.msra.mxu0 0.0
    %336 = vmatpush.msra.mxu0 0.0
    %337 = vmatpush.msra.mxu0 0.0
    %338 = vmatpush.msra.mxu0 0.0
    %339 = vmatpush.msra.mxu0 0.0
    %340 = vmatpush.msra.mxu0 0.0
    %341 = vmatpush.msra.mxu0 %v322
    %342 = vmatmul.f32.gmra.mxu0 %v62
    %v343 = vpop.f32.mrf.mxu0
    %v344 = vadd.f32 0.0, %v343
    %345 = vdwg.mxu0
    %346 = vmatpush.msra.mxu0 0.0
    %347 = vmatpush.msra.mxu0 0.0
    %348 = vmatpush.msra.mxu0 0.0
    %349 = vmatpush.msra.mxu0 0.0
    %350 = vmatpush.msra.mxu0 0.0
    %351 = vmatpush.msra.mxu0 0.0
    %352 = vmatpush.msra.mxu0 0.0
    %353 = vmatpush.msra.mxu0 0.0
    %354 = vmatpush.msra.mxu0 0.0
    %355 = vmatpush.msra.mxu0 0.0
    %356 = vmatpush.msra.mxu0 0.0
    %357 = vmatpush.msra.mxu0 0.0
    %358 = vmatpush.msra.mxu0 0.0
    %359 = vmatpush.msra.mxu0 0.0
    %360 = vmatpush.msra.mxu0 0.0
    %361 = vmatpush.msra.mxu0 %v324
    %362 = vmatmul.f32.gmra.mxu0 %v62
    %v363 = vpop.f32.mrf.mxu0
    %v364 = vadd.f32 0.0, %v363
    %365 = vdwg.mxu0
    %366 = vst [vmem:[#allocation1] ss:$2 sm:$0xff] %v317
    %v367 = vld.sshfl [vmem:[#allocation1] sm:$0xff pattern:$0x75316420]
    %v368 = vld.sshfl [vmem:[#allocation1 + $0x8] sm:$0xff pattern:$0x75316420]
    %v369 = vsel %vm64, %v367, 0
    %v371 = vsel %vm64, %v368, 0
    %373 = vmatpush.msra.mxu0 0.0
    %374 = vmatpush.msra.mxu0 0.0
    %375 = vmatpush.msra.mxu0 0.0
    %376 = vmatpush.msra.mxu0 0.0
    %377 = vmatpush.msra.mxu0 0.0
    %378 = vmatpush.msra.mxu0 0.0
    %379 = vmatpush.msra.mxu0 0.0
    %380 = vmatpush.msra.mxu0 0.0
    %381 = vmatpush.msra.mxu0 0.0
    %382 = vmatpush.msra.mxu0 0.0
    %383 = vmatpush.msra.mxu0 0.0
    %384 = vmatpush.msra.mxu0 0.0
    %385 = vmatpush.msra.mxu0 0.0
    %386 = vmatpush.msra.mxu0 0.0
    %387 = vmatpush.msra.mxu0 0.0
    %388 = vmatpush.msra.mxu0 %v369
    %389 = vmatmul.f32.gmra.mxu0 %v113
    %v390 = vpop.f32.mrf.mxu0
    %v391 = vadd.f32 0.0, %v390
    %392 = vdwg.mxu0
    %393 = vmatpush.msra.mxu0 0.0
    %394 = vmatpush.msra.mxu0 0.0
    %395 = vmatpush.msra.mxu0 0.0
    %396 = vmatpush.msra.mxu0 0.0
    %397 = vmatpush.msra.mxu0 0.0
    %398 = vmatpush.msra.mxu0 0.0
    %399 = vmatpush.msra.mxu0 0.0
    %400 = vmatpush.msra.mxu0 0.0
    %401 = vmatpush.msra.mxu0 0.0
    %402 = vmatpush.msra.mxu0 0.0
    %403 = vmatpush.msra.mxu0 0.0
    %404 = vmatpush.msra.mxu0 0.0
    %405 = vmatpush.msra.mxu0 0.0
    %406 = vmatpush.msra.mxu0 0.0
    %407 = vmatpush.msra.mxu0 0.0
    %408 = vmatpush.msra.mxu0 %v371
    %409 = vmatmul.f32.gmra.mxu0 %v113
    %v410 = vpop.f32.mrf.mxu0
    %v411 = vadd.f32 0.0, %v410
    %412 = vdwg.mxu0
    %s413 = scalar_lea.vmem [#allocation7], 16
    %414 = vst [vmem:[%s413] sm:$0xff] %v166
    %415 = vst.msk [vmem:[%s413 + $0x8] sm:$0xff] %vm170, %v166
    %v416 = vadd.f32 %v175, %v391
    %v417 = vmul.f32 %v416, 0.5
    %v418 = vtanh.pop %v417
    %v419 = vmul.f32 %v418, 0.5
    %v420 = vadd.f32 %v419, 0.5
    %422 = vrot.lane.b32.xlu0 %v420, 69
    %v423 = vpop.permute.xlu0 %422
    %425 = vst.msk [vmem:[%s413] sm:$0xf] %vm186, %v423
    %v426 = vadd.f32 %v175, %v344
    %428 = vrot.lane.b32.xlu0 %v391, 112
    %v429 = vpop.permute.xlu0 %428
    %v431 = vadd.f32 %v426, %v429
    %v432 = vmul.f32 %v431, 0.5
    %v433 = vtanh.pop %v432
    %v434 = vmul.f32 %v433, 0.5
    %v435 = vadd.f32 %v434, 0.5
    %437 = vrot.lane.b32.xlu0 %v435, 91
    %v438 = vpop.permute.xlu0 %437
    %440 = vst.msk [vmem:[%s413] sm:$0xf] %vm202, %v438
    %441 = vrot.lane.b32.xlu0 %v435, 97
    %v442 = vpop.permute.xlu0 %441
    %v443 = vrot.slane %v442, 4
    %v444 = vsel %vm207, %v443, %v442
    %446 = vst.msk [vmem:[%s413] sm:$0xff] %vm212, %v444
    %447 = vrot.lane.b32.xlu0 %v435, 103
    %v448 = vpop.permute.xlu0 %447
    %450 = vst.msk [vmem:[%s413 + $0x4] sm:$0xf] %vm217, %v448
    %451 = vrot.lane.b32.xlu0 %v435, 109
    %v452 = vpop.permute.xlu0 %451
    %454 = vst.msk [vmem:[%s413 + $0x4] sm:$0xf] %vm222, %v452
    %455 = vrot.lane.b32.xlu0 %v435, 115
    %v456 = vpop.permute.xlu0 %455
    %458 = vst.msk [vmem:[%s413 + $0x4] sm:$0xf] %vm227, %v456
    %459 = vrot.lane.b32.xlu0 %v435, 121
    %v460 = vpop.permute.xlu0 %459
    %462 = vst.msk [vmem:[%s413 + $0x4] sm:$0xf] %vm232, %v460
    %463 = vrot.lane.b32.xlu0 %v435, 127
    %v464 = vpop.permute.xlu0 %463
    %466 = vst.msk [vmem:[%s413 + $0x4] sm:$0xf] %vm237, %v464
    %468 = vrot.lane.b32.xlu0 %v411, 112
    %v469 = vpop.permute.xlu0 %468
    %v471 = vadd.f32 %v426, %v469
    %v472 = vmul.f32 %v471, 0.5
    %v473 = vtanh.pop %v472
    %v474 = vmul.f32 %v473, 0.5
    %v475 = vadd.f32 %v474, 0.5
    %477 = vrot.lane.b32.xlu0 %v475, 5
    %v478 = vpop.permute.xlu0 %477
    %v479 = vrot.slane %v478, 4
    %v480 = vsel %vm252, %v479, %v478
    %482 = vst.msk [vmem:[%s413 + $0x4] sm:$0xff] %vm257, %v480
    %v483 = vadd.f32 %v175, %v364
    %v484 = vadd.f32 %v483, %v469
    %v485 = vmul.f32 %v484, 0.5
    %v486 = vtanh.pop %v485
    %v487 = vmul.f32 %v486, 0.5
    %v488 = vadd.f32 %v487, 0.5
    %490 = vrot.lane.b32.xlu0 %v488, 11
    %v491 = vpop.permute.xlu0 %490
    %493 = vst.msk [vmem:[%s413 + $0x8] sm:$0xf] %vm269, %v491
    %494 = vrot.lane.b32.xlu0 %v488, 17
    %v495 = vpop.permute.xlu0 %494
    %497 = vst.msk [vmem:[%s413 + $0x8] sm:$0xf] %vm274, %v495
    %498 = vrot.lane.b32.xlu0 %v488, 23
    %v499 = vpop.permute.xlu0 %498
    %501 = vst.msk [vmem:[%s413 + $0x8] sm:$0xf] %vm279, %v499
    %502 = vrot.lane.b32.xlu0 %v488, 29
    %v503 = vpop.permute.xlu0 %502
    %505 = vst.msk [vmem:[%s413 + $0x8] sm:$0xf] %vm284, %v503
    %506 = vrot.lane.b32.xlu0 %v488, 35
    %v507 = vpop.permute.xlu0 %506
    %509 = vst.msk [vmem:[%s413 + $0x8] sm:$0xf] %vm289, %v507
    %510 = vrot.lane.b32.xlu0 %v488, 41
    %v511 = vpop.permute.xlu0 %510
    %v512 = vrot.slane %v511, 4
    %v513 = vsel %vm294, %v512, %v511
    %515 = vst.msk [vmem:[%s413 + $0x8] sm:$0xff] %vm299, %v513
    %516 = vrot.lane.b32.xlu0 %v488, 47
    %v517 = vpop.permute.xlu0 %516
    %519 = vst.msk [vmem:[%s413 + $0xc] sm:$0xf] %vm304, %v517
    %v520 = vmul.f32 %v483, 0.5
    %v521 = vtanh.pop %v520
    %v522 = vmul.f32 %v521, 0.5
    %v523 = vadd.f32 %v522, 0.5
    %525 = vrot.lane.b32.xlu0 %v523, 53
    %v526 = vpop.permute.xlu0 %525
    %528 = vst.msk [vmem:[%s413 + $0xc] sm:$0xf] %vm314, %v526
    // Predicated region
    $region26: #{tpu_custom_call.1} parent=1 // pred_check
      _
    $region27: #{tpu_custom_call.1} parent=1 // pred_check_branch
      %530 = sbr.rel (0) target = $region29
    $region28: #{tpu_custom_call.1} parent=1 // pred_region
      %532 = vsyncadd [#allocation4], 0
      %s533 = sshll.u32 [#allocation7], 4
      %s534 = int_to_ptr.vmem [resolvable:$true] %s533
      %s535 = sshll.u32 %s4, 4
      %s536 = int_to_ptr.hbm [resolvable:$true] %s535
      %541 = dma.vmem_to_hbm [thread:$0]  %s534, 512, %s536, [#allocation4], 256, 256, 16
    $region29: #{tpu_custom_call.1} parent=1 // pred_fallthru
      _
    // Predicated region
    $region30: #{tpu_custom_call.1} parent=1 // pred_check
      _
    $region31: #{tpu_custom_call.1} parent=1 // pred_check_branch
      %543 = sbr.rel (0) target = $region33
    $region32: #{tpu_custom_call.1} parent=1 // pred_region
      %545 = dma.done [#allocation4], 512
    $region33: #{tpu_custom_call.1} parent=1 // pred_fallthru
      _
    %546 = vsyncpa [#allocation3], 1
    %547 = vsyncpa [#allocation6], 1
    %548 = vsyncpa [#allocation4], 1

</llo_original>
